<compile_context>
chip_gen: v5e
topology: v5e:2x2
jax: 0.10.0
libtpu: 0.0.40
codegen_flags: <defaults>
</compile_context>

<pallas_src>
import functools

import jax
import jax.numpy as jnp
import numpy as np
from jax.experimental import pallas as pl
from jax.experimental.pallas import tpu as pltpu

LANE = 128          # lane width / channel alignment
CH_ALIGN = 128
VMEM_LIMIT_BYTES = 32 * 1024 * 1024


def _round_up(x, m):
    return (x + m - 1) // m * m


# ----------------------------------------------------------------------------
# Kernel 1: key projection (per batch element, channel-major)
#   kstack: (3C_text packed/padded, T2_p) bf16
#   kenc  : (C_att_p, T2_p)              bf16
#   ksq   : (1, T2_p)                    f32   (= sum_c kenc_c^2)
# ----------------------------------------------------------------------------
def _key_encode_kernel(kstack_ref, w3_ref, b3_ref, w1_ref, b1_ref,
                       kenc_ref, ksq_ref):
    # Conv1d(k=3) as one MXU matmul (bf16 in, f32 accumulate) + ReLU.
    h = jnp.dot(w3_ref[...], kstack_ref[...],
                preferred_element_type=jnp.float32) + b3_ref[...]
    h = jnp.maximum(h, 0.0)
    # Conv1d(k=1)
    kenc = jnp.dot(w1_ref[...], h.astype(w1_ref.dtype),
                   preferred_element_type=jnp.float32) + b1_ref[...]
    kenc_ref[...] = kenc.astype(kenc_ref.dtype)
    ksq_ref[...] = jnp.sum(kenc * kenc, axis=0, keepdims=True)


# ----------------------------------------------------------------------------
# Kernel 2: query projection + distance logits + softmax, per (batch, T1 tile)
#   Time-major query path; logits = 2*temp*(q.k) - temp*|q|^2 - temp*|k|^2.
# ----------------------------------------------------------------------------
def _attention_kernel(qstack_ref, kenc_ref, ksq_ref,
                      w3_ref, b3_ref, w1a_ref, b1a_ref, w1b_ref, b1b_ref,
                      attn_ref, logprob_ref, *, temp, t2_real, mask_t2):
    # --- query projection: Conv3 -> ReLU -> Conv1 -> ReLU -> Conv1 ----------
    h = jnp.dot(qstack_ref[...], w3_ref[...],
                preferred_element_type=jnp.float32) + b3_ref[...]
    h = jnp.maximum(h, 0.0)
    h = jnp.dot(h.astype(w1a_ref.dtype), w1a_ref[...],
                preferred_element_type=jnp.float32) + b1a_ref[...]
    h = jnp.maximum(h, 0.0)
    qenc = jnp.dot(h.astype(w1b_ref.dtype), w1b_ref[...],
                   preferred_element_type=jnp.float32) + b1b_ref[...]  # (tile, C_att_p)

    # --- split distance: bf16 cross term + f32 rank-1 corrections ------------
    qsq = jnp.sum(qenc * qenc, axis=1, keepdims=True)                  # (tile, 1)
    cross = jnp.dot(qenc.astype(kenc_ref.dtype), kenc_ref[...],
                    preferred_element_type=jnp.float32)                # (tile, T2_p)
    logits = (2.0 * temp) * cross - temp * qsq - temp * ksq_ref[...]
    logprob_ref[...] = logits                                          # pre-softmax logits

    # --- softmax over T2 (mask padded columns only when padding exists) ------
    if mask_t2:
        col = jax.lax.broadcasted_iota(jnp.int32, logits.shape, 1)
        logits = jnp.where(col < t2_real, logits, -1e30)
    m = jnp.max(logits, axis=-1, keepdims=True)
    e = jnp.exp(logits - m)
    s = jnp.sum(e, axis=-1, keepdims=True)
    attn_ref[...] = e * pl.reciprocal(s, approx=True)


# ----------------------------------------------------------------------------
# Wrapper: layout plumbing (tap stacking, channel padding, weight flattening)
# ----------------------------------------------------------------------------
def _pad2(w, rows, cols):
    return jnp.pad(w, ((0, rows - w.shape[0]), (0, cols - w.shape[1])))


def _stack3(x, t_out):
    # x: (B, C, T) -> (B, 3*C, t_out); row tap*C + c holds x_pad[b, c, t + tap]
    # ('same' padding for k=3).  Taps are packed contiguously (no per-tap pad).
    B, C, T = x.shape
    xp = jnp.pad(x, ((0, 0), (0, 0), (1, 1 + t_out - T)))
    return jnp.concatenate([xp[:, :, 0:t_out],
                            xp[:, :, 1:t_out + 1],
                            xp[:, :, 2:t_out + 2]], axis=1)


def conv_attention_forward(queries, keys, params, temp=0.0005, tile_t1=256):
    """queries: (B, C_mel, T1), keys: (B, C_text, T2)
    -> (attn, attn_logprob), each (B, 1, T1, T2)."""
    # TODO(synk): optional `mask` / `attn_prior` / `query_lens` arguments of the
    # torch forward are not implemented (all default to None / unused).
    B, C_mel, T1 = queries.shape
    _, C_text, T2 = keys.shape
    (w_k3, b_k3, w_k1, b_k1, w_q3, b_q3, w_q1a, b_q1a, w_q1b, b_q1b) = params
    C_att = w_k1.shape[0]

    # Padded sizes (MXU / lane alignment).  Taps packed BEFORE padding.
    C_in_q = _round_up(3 * C_mel, CH_ALIGN)     # stacked query conv3 input
    C_mid_q = _round_up(2 * C_mel, CH_ALIGN)
    C_hid_q = _round_up(C_mel, CH_ALIGN)
    C_in_k = _round_up(3 * C_text, CH_ALIGN)    # stacked key conv3 input
    C_mid_k = _round_up(2 * C_text, CH_ALIGN)
    C_att_p = _round_up(C_att, CH_ALIGN)
    T2_p = _round_up(T2, LANE)

    # T1 tiling: big tiles (better MXU fill / fewer steps), clamped to T1.
    tile_t1 = _round_up(max(LANE, min(tile_t1, _round_up(T1, LANE))), LANE)
    T1_p = _round_up(T1, tile_t1)
    n_t1 = T1_p // tile_t1

    # ---- key-path weights (channel-major: W @ x) ----------------------------
    w_k3f = _pad2(jnp.transpose(w_k3, (0, 2, 1)).reshape(2 * C_text, 3 * C_text),
                  C_mid_k, C_in_k).astype(jnp.bfloat16)
    b_k3p = jnp.pad(b_k3, (0, C_mid_k - 2 * C_text)).reshape(C_mid_k, 1).astype(jnp.float32)
    w_k1p = _pad2(w_k1[:, :, 0], C_att_p, C_mid_k).astype(jnp.bfloat16)
    b_k1p = jnp.pad(b_k1, (0, C_att_p - C_att)).reshape(C_att_p, 1).astype(jnp.float32)

    # ---- query-path weights (time-major: x @ W) ------------------------------
    w_q3f = _pad2(jnp.transpose(w_q3, (2, 1, 0)).reshape(3 * C_mel, 2 * C_mel),
                  C_in_q, C_mid_q).astype(jnp.bfloat16)
    b_q3p = jnp.pad(b_q3, (0, C_mid_q - 2 * C_mel)).reshape(1, C_mid_q).astype(jnp.float32)
    w_q1ap = _pad2(w_q1a[:, :, 0].T, C_mid_q, C_hid_q).astype(jnp.bfloat16)
    b_q1ap = jnp.pad(b_q1a, (0, C_hid_q - C_mel)).reshape(1, C_hid_q).astype(jnp.float32)
    w_q1bp = _pad2(w_q1b[:, :, 0].T, C_hid_q, C_att_p).astype(jnp.bfloat16)
    b_q1bp = jnp.pad(b_q1b, (0, C_att_p - C_att)).reshape(1, C_att_p).astype(jnp.float32)

    # ---- activations: 3-tap packing, channel/time padding --------------------
    k_stack = jnp.pad(_stack3(keys, T2_p),
                      ((0, 0), (0, C_in_k - 3 * C_text), (0, 0))).astype(jnp.bfloat16)
    q_stack = jnp.pad(_stack3(queries, T1_p),
                      ((0, 0), (0, C_in_q - 3 * C_mel), (0, 0)))
    q_stack = jnp.transpose(q_stack, (0, 2, 1)).astype(jnp.bfloat16)   # (B, T1_p, C_in_q)

    # ---- kernel 1: key encoding, once per batch element ----------------------
    kenc, ksq = pl.pallas_call(
        _key_encode_kernel,
        out_shape=(jax.ShapeDtypeStruct((B, C_att_p, T2_p), jnp.bfloat16),
                   jax.ShapeDtypeStruct((B, 1, T2_p), jnp.float32)),
        grid_spec=pltpu.PrefetchScalarGridSpec(
            num_scalar_prefetch=0,
            grid=(B,),
            in_specs=[
                pl.BlockSpec((None, C_in_k, T2_p), lambda b: (b, 0, 0)),
                pl.BlockSpec(w_k3f.shape, lambda b: (0, 0)),
                pl.BlockSpec(b_k3p.shape, lambda b: (0, 0)),
                pl.BlockSpec(w_k1p.shape, lambda b: (0, 0)),
                pl.BlockSpec(b_k1p.shape, lambda b: (0, 0)),
            ],
            out_specs=[
                pl.BlockSpec((None, C_att_p, T2_p), lambda b: (b, 0, 0)),
                pl.BlockSpec((None, 1, T2_p), lambda b: (b, 0, 0)),
            ],
        ),
        compiler_params=pltpu.CompilerParams(
            dimension_semantics=("parallel",),
            vmem_limit_bytes=VMEM_LIMIT_BYTES),
    )(k_stack, w_k3f, b_k3p, w_k1p, b_k1p)

    # ---- kernel 2: query proj + distance logits + softmax, (B, T1-tile) grid -
    attn_p, logprob_p = pl.pallas_call(
        functools.partial(_attention_kernel, temp=temp, t2_real=T2,
                          mask_t2=(T2 != T2_p)),
        out_shape=(jax.ShapeDtypeStruct((B, 1, T1_p, T2_p), jnp.float32),
                   jax.ShapeDtypeStruct((B, 1, T1_p, T2_p), jnp.float32)),
        grid_spec=pltpu.PrefetchScalarGridSpec(
            num_scalar_prefetch=0,
            grid=(B, n_t1),
            in_specs=[
                pl.BlockSpec((None, tile_t1, C_in_q), lambda b, t: (b, t, 0)),
                pl.BlockSpec((None, C_att_p, T2_p), lambda b, t: (b, 0, 0)),
                pl.BlockSpec((None, 1, T2_p), lambda b, t: (b, 0, 0)),
                pl.BlockSpec(w_q3f.shape, lambda b, t: (0, 0)),
                pl.BlockSpec(b_q3p.shape, lambda b, t: (0, 0)),
                pl.BlockSpec(w_q1ap.shape, lambda b, t: (0, 0)),
                pl.BlockSpec(b_q1ap.shape, lambda b, t: (0, 0)),
                pl.BlockSpec(w_q1bp.shape, lambda b, t: (0, 0)),
                pl.BlockSpec(b_q1bp.shape, lambda b, t: (0, 0)),
            ],
            out_specs=[
                pl.BlockSpec((None, None, tile_t1, T2_p), lambda b, t: (b, 0, t, 0)),
                pl.BlockSpec((None, None, tile_t1, T2_p), lambda b, t: (b, 0, t, 0)),
            ],
        ),
        compiler_params=pltpu.CompilerParams(
            dimension_semantics=("parallel", "parallel"),
            vmem_limit_bytes=VMEM_LIMIT_BYTES),
    )(q_stack, kenc, ksq, w_q3f, b_q3p, w_q1ap, b_q1ap, w_q1bp, b_q1bp)

    # Slice off T1 / T2 padding.
    return attn_p[:, :, :T1, :T2], logprob_p[:, :, :T1, :T2]


# ----------------------------------------------------------------------------
# Deterministic parameter init (xavier_uniform, matching torch init gains)
# ----------------------------------------------------------------------------
def _xavier_conv1d(key, out_c, in_c, k, gain):
    fan_in, fan_out = in_c * k, out_c * k
    a = gain * np.sqrt(6.0 / (fan_in + fan_out))
    return jax.random.uniform(key, (out_c, in_c, k), jnp.float32, -a, a)


def init_params(key, n_mel, n_text, n_att):
    ks = jax.random.split(key, 10)
    relu_gain = float(np.sqrt(2.0))
    # key_proj: Conv3(n_text -> 2*n_text) -> ReLU -> Conv1(2*n_text -> n_att)
    w_k3 = _xavier_conv1d(ks[0], 2 * n_text, n_text, 3, relu_gain)
    b_k3 = jax.random.uniform(ks[1], (2 * n_text,), jnp.float32, -0.01, 0.01)
    w_k1 = _xavier_conv1d(ks[2], n_att, 2 * n_text, 1, 1.0)
    b_k1 = jax.random.uniform(ks[3], (n_att,), jnp.float32, -0.01, 0.01)
    # query_proj: Conv3(n_mel -> 2*n_mel) -> ReLU -> Conv1(-> n_mel) -> ReLU
    #             -> Conv1(-> n_att)
    w_q3 = _xavier_conv1d(ks[4], 2 * n_mel, n_mel, 3, relu_gain)
    b_q3 = jax.random.uniform(ks[5], (2 * n_mel,), jnp.float32, -0.01, 0.01)
    w_q1a = _xavier_conv1d(ks[6], n_mel, 2 * n_mel, 1, 1.0)
    b_q1a = jax.random.uniform(ks[7], (n_mel,), jnp.float32, -0.01, 0.01)
    w_q1b = _xavier_conv1d(ks[8], n_att, n_mel, 1, 1.0)
    b_q1b = jax.random.uniform(ks[9], (n_att,), jnp.float32, -0.01, 0.01)
    return (w_k3, b_k3, w_k1, b_k1, w_q3, b_q3, w_q1a, b_q1a, w_q1b, b_q1b)


# ----------------------------------------------------------------------------
# Pure-JAX reference (mirrors the torch forward) for a correctness check
# ----------------------------------------------------------------------------
def ref_forward(queries, keys, params, temp=0.0005):
    (w_k3, b_k3, w_k1, b_k1, w_q3, b_q3, w_q1a, b_q1a, w_q1b, b_q1b) = params

    def conv1d(x, w, b):
        # x: (B, Cin, T); w: (Cout, Cin, K) with 'same' padding (K odd)
        K = w.shape[-1]
        p = (K - 1) // 2
        xp = jnp.pad(x, ((0, 0), (0, 0), (p, p)))
        T = x.shape[-1]
        y = sum(jnp.einsum('oi,bit->bot', w[:, :, t], xp[:, :, t:t + T])
                for t in range(K))
        return y + b[None, :, None]

    k_enc = conv1d(jnp.maximum(conv1d(keys, w_k3, b_k3), 0.0), w_k1, b_k1)
    q = jnp.maximum(conv1d(queries, w_q3, b_q3), 0.0)
    q = jnp.maximum(conv1d(q, w_q1a, b_q1a), 0.0)
    q_enc = conv1d(q, w_q1b, b_q1b)

    attn = (q_enc[:, :, :, None] - k_enc[:, :, None, :]) ** 2   # B,C,T1,T2
    attn = -temp * jnp.sum(attn, axis=1, keepdims=True)         # B,1,T1,T2
    logprob = attn
    attn = jax.nn.softmax(attn, axis=3)
    return attn, logprob


# ----------------------------------------------------------------------------
if __name__ == "__main__":
    B, n_mel, n_text, n_att = 2, 16, 32, 16
    T1, T2 = 200, 40          # non-aligned on purpose: exercises T1 tiling + T2 mask

    key = jax.random.PRNGKey(0)
    k_q, k_k, k_p = jax.random.split(key, 3)
    queries = jax.random.normal(k_q, (B, n_mel, T1), jnp.float32)
    keys = jax.random.normal(k_k, (B, n_text, T2), jnp.float32)
    params = init_params(k_p, n_mel, n_text, n_att)

    fwd = jax.jit(conv_attention_forward)
    attn, attn_logprob = fwd(queries, keys, params)
    jax.block_until_ready((attn, attn_logprob))

    attn_ref, logprob_ref = ref_forward(queries, keys, params)
    np.testing.assert_allclose(np.asarray(attn), np.asarray(attn_ref),
                               rtol=2e-2, atol=2e-3)
    np.testing.assert_allclose(np.asarray(attn_logprob), np.asarray(logprob_ref),
                               rtol=2e-2, atol=2e-3)
    # softmax rows over T2 must sum to ~1 (approx reciprocal tolerance)
    np.testing.assert_allclose(np.asarray(attn).sum(-1), 1.0, rtol=0, atol=5e-3)

    print("KERNEL_OK")
</pallas_src>

<mosaic_0001>
module attributes {stable_mosaic.version = 11 : i64} {
  func.func @_key_encode_kernel(%arg0: i32, %arg1: memref<1x128x128xbf16, #tpu.memory_space<vmem>>, %arg2: memref<128x128xbf16, #tpu.memory_space<vmem>>, %arg3: memref<128x1xf32, #tpu.memory_space<vmem>>, %arg4: memref<128x128xbf16, #tpu.memory_space<vmem>>, %arg5: memref<128x1xf32, #tpu.memory_space<vmem>>, %arg6: memref<1x128x128xbf16, #tpu.memory_space<vmem>>, %arg7: memref<1x1x128xf32, #tpu.memory_space<vmem>>) attributes {dimension_semantics = [#tpu.dimension_semantics<parallel>], iteration_bounds = array<i64: 2>, scalar_prefetch = 0 : i64, scratch_operands = 0 : i64, tpu.core_type = #tpu.core_type<tc>, window_params = [{transform_indices = @transform_0, window_bounds = array<i64: 1, 128, 128>}, {pipeline_mode = #tpu.pipeline_mode<synchronous>, transform_indices = @transform_1, window_bounds = array<i64: 128, 128>}, {pipeline_mode = #tpu.pipeline_mode<synchronous>, transform_indices = @transform_2, window_bounds = array<i64: 128, 1>}, {pipeline_mode = #tpu.pipeline_mode<synchronous>, transform_indices = @transform_3, window_bounds = array<i64: 128, 128>}, {pipeline_mode = #tpu.pipeline_mode<synchronous>, transform_indices = @transform_4, window_bounds = array<i64: 128, 1>}, {transform_indices = @transform_5, window_bounds = array<i64: 1, 128, 128>}, {transform_indices = @transform_6, window_bounds = array<i64: 1, 1, 128>}]} {
    %c0 = arith.constant 0 : index
    %c0_0 = arith.constant 0 : index
    %0 = vector.load %arg2[%c0, %c0_0] : memref<128x128xbf16, #tpu.memory_space<vmem>>, vector<128x128xbf16>
    %c0_1 = arith.constant 0 : index
    %c0_2 = arith.constant 0 : index
    %c0_3 = arith.constant 0 : index
    %1 = vector.load %arg1[%c0_1, %c0_2, %c0_3] : memref<1x128x128xbf16, #tpu.memory_space<vmem>>, vector<1x128x128xbf16>
    %2 = vector.shape_cast %1 : vector<1x128x128xbf16> to vector<128x128xbf16>
    %cst = arith.constant dense<0.000000e+00> : vector<128x128xf32>
    %3 = tpu.matmul %0, %2, %cst {dimension_numbers = #tpu.dot_dimension_numbers<[1], [0], [0], [1], [0, 0, 1, 1], [], []>} : vector<128x128xbf16>, vector<128x128xbf16>, vector<128x128xf32> -> vector<128x128xf32>
    %c0_4 = arith.constant 0 : index
    %c0_5 = arith.constant 0 : index
    %4 = vector.load %arg3[%c0_4, %c0_5] : memref<128x1xf32, #tpu.memory_space<vmem>>, vector<128x1xf32>
    %5 = vector.broadcast %4 : vector<128x1xf32> to vector<128x128xf32>
    %6 = arith.addf %3, %5 : vector<128x128xf32>
    %cst_6 = arith.constant 0.000000e+00 : f32
    %7 = vector.broadcast %cst_6 : f32 to vector<128x128xf32>
    %8 = arith.maximumf %6, %7 : vector<128x128xf32>
    %c0_7 = arith.constant 0 : index
    %c0_8 = arith.constant 0 : index
    %9 = vector.load %arg4[%c0_7, %c0_8] : memref<128x128xbf16, #tpu.memory_space<vmem>>, vector<128x128xbf16>
    %10 = arith.truncf %8 : vector<128x128xf32> to vector<128x128xbf16>
    %cst_9 = arith.constant dense<0.000000e+00> : vector<128x128xf32>
    %11 = tpu.matmul %9, %10, %cst_9 {dimension_numbers = #tpu.dot_dimension_numbers<[1], [0], [0], [1], [0, 0, 1, 1], [], []>} : vector<128x128xbf16>, vector<128x128xbf16>, vector<128x128xf32> -> vector<128x128xf32>
    %c0_10 = arith.constant 0 : index
    %c0_11 = arith.constant 0 : index
    %12 = vector.load %arg5[%c0_10, %c0_11] : memref<128x1xf32, #tpu.memory_space<vmem>>, vector<128x1xf32>
    %13 = vector.broadcast %12 : vector<128x1xf32> to vector<128x128xf32>
    %14 = arith.addf %11, %13 : vector<128x128xf32>
    %15 = arith.truncf %14 : vector<128x128xf32> to vector<128x128xbf16>
    %c0_12 = arith.constant 0 : index
    %c0_13 = arith.constant 0 : index
    %c0_14 = arith.constant 0 : index
    %16 = vector.load %arg6[%c0_12, %c0_13, %c0_14] : memref<1x128x128xbf16, #tpu.memory_space<vmem>>, vector<1x128x128xbf16>
    %17 = vector.shape_cast %16 : vector<1x128x128xbf16> to vector<128x128xbf16>
    %18 = vector.shape_cast %15 : vector<128x128xbf16> to vector<1x128x128xbf16>
    tpu.vector_store %arg6[%c0_12, %c0_13, %c0_14], %18 {strides = array<i32>} : memref<1x128x128xbf16, #tpu.memory_space<vmem>>, vector<1x128x128xbf16>,
    %19 = arith.mulf %14, %14 : vector<128x128xf32>
    %cst_15 = arith.constant dense<0.000000e+00> : vector<128xf32>
    %20 = vector.multi_reduction <add>, %19, %cst_15 [0] : vector<128x128xf32> to vector<128xf32>
    %21 = vector.shape_cast %20 : vector<128xf32> to vector<1x128xf32>
    %c0_16 = arith.constant 0 : index
    %c0_17 = arith.constant 0 : index
    %c0_18 = arith.constant 0 : index
    %22 = vector.load %arg7[%c0_16, %c0_17, %c0_18] : memref<1x1x128xf32, #tpu.memory_space<vmem>>, vector<1x1x128xf32>
    %23 = vector.shape_cast %22 : vector<1x1x128xf32> to vector<1x128xf32>
    %24 = vector.shape_cast %21 : vector<1x128xf32> to vector<1x1x128xf32>
    tpu.vector_store %arg7[%c0_16, %c0_17, %c0_18], %24 {strides = array<i32>} : memref<1x1x128xf32, #tpu.memory_space<vmem>>, vector<1x1x128xf32>,
    return
  }
  func.func @transform_0(%arg0: i32) -> (i32, i32, i32) {
    %c0_i32 = arith.constant 0 : i32
    %c0_i32_0 = arith.constant 0 : i32
    %c0_i32_1 = arith.constant 0 : i32
    return %arg0, %c0_i32, %c0_i32_0 : i32, i32, i32
  }
  func.func @transform_1(%arg0: i32) -> (i32, i32) {
    %c0_i32 = arith.constant 0 : i32
    %c0_i32_0 = arith.constant 0 : i32
    %c0_i32_1 = arith.constant 0 : i32
    return %c0_i32, %c0_i32_0 : i32, i32
  }
  func.func @transform_2(%arg0: i32) -> (i32, i32) {
    %c0_i32 = arith.constant 0 : i32
    %c0_i32_0 = arith.constant 0 : i32
    %c0_i32_1 = arith.constant 0 : i32
    return %c0_i32, %c0_i32_0 : i32, i32
  }
  func.func @transform_3(%arg0: i32) -> (i32, i32) {
    %c0_i32 = arith.constant 0 : i32
    %c0_i32_0 = arith.constant 0 : i32
    %c0_i32_1 = arith.constant 0 : i32
    return %c0_i32, %c0_i32_0 : i32, i32
  }
  func.func @transform_4(%arg0: i32) -> (i32, i32) {
    %c0_i32 = arith.constant 0 : i32
    %c0_i32_0 = arith.constant 0 : i32
    %c0_i32_1 = arith.constant 0 : i32
    return %c0_i32, %c0_i32_0 : i32, i32
  }
  func.func @transform_5(%arg0: i32) -> (i32, i32, i32) {
    %c0_i32 = arith.constant 0 : i32
    %c0_i32_0 = arith.constant 0 : i32
    %c0_i32_1 = arith.constant 0 : i32
    return %arg0, %c0_i32, %c0_i32_0 : i32, i32, i32
  }
  func.func @transform_6(%arg0: i32) -> (i32, i32, i32) {
    %c0_i32 = arith.constant 0 : i32
    %c0_i32_0 = arith.constant 0 : i32
    %c0_i32_1 = arith.constant 0 : i32
    return %arg0, %c0_i32, %c0_i32_0 : i32, i32, i32
  }
}

module attributes {stable_mosaic.version = 11 : i64} {
  func.func @_attention_kernel(%arg0: i32, %arg1: i32, %arg2: memref<1x256x128xbf16, #tpu.memory_space<vmem>>, %arg3: memref<1x128x128xbf16, #tpu.memory_space<vmem>>, %arg4: memref<1x1x128xf32, #tpu.memory_space<vmem>>, %arg5: memref<128x128xbf16, #tpu.memory_space<vmem>>, %arg6: memref<1x128xf32, #tpu.memory_space<vmem>>, %arg7: memref<128x128xbf16, #tpu.memory_space<vmem>>, %arg8: memref<1x128xf32, #tpu.memory_space<vmem>>, %arg9: memref<128x128xbf16, #tpu.memory_space<vmem>>, %arg10: memref<1x128xf32, #tpu.memory_space<vmem>>, %arg11: memref<1x1x256x128xf32, #tpu.memory_space<vmem>>, %arg12: memref<1x1x256x128xf32, #tpu.memory_space<vmem>>) attributes {dimension_semantics = [#tpu.dimension_semantics<parallel>, #tpu.dimension_semantics<parallel>], iteration_bounds = array<i64: 2, 1>, scalar_prefetch = 0 : i64, scratch_operands = 0 : i64, tpu.core_type = #tpu.core_type<tc>, window_params = [{transform_indices = @transform_0, window_bounds = array<i64: 1, 256, 128>}, {transform_indices = @transform_1, window_bounds = array<i64: 1, 128, 128>}, {transform_indices = @transform_2, window_bounds = array<i64: 1, 1, 128>}, {pipeline_mode = #tpu.pipeline_mode<synchronous>, transform_indices = @transform_3, window_bounds = array<i64: 128, 128>}, {pipeline_mode = #tpu.pipeline_mode<synchronous>, transform_indices = @transform_4, window_bounds = array<i64: 1, 128>}, {pipeline_mode = #tpu.pipeline_mode<synchronous>, transform_indices = @transform_5, window_bounds = array<i64: 128, 128>}, {pipeline_mode = #tpu.pipeline_mode<synchronous>, transform_indices = @transform_6, window_bounds = array<i64: 1, 128>}, {pipeline_mode = #tpu.pipeline_mode<synchronous>, transform_indices = @transform_7, window_bounds = array<i64: 128, 128>}, {pipeline_mode = #tpu.pipeline_mode<synchronous>, transform_indices = @transform_8, window_bounds = array<i64: 1, 128>}, {transform_indices = @transform_9, window_bounds = array<i64: 1, 1, 256, 128>}, {transform_indices = @transform_10, window_bounds = array<i64: 1, 1, 256, 128>}]} {
    %c0 = arith.constant 0 : index
    %c0_0 = arith.constant 0 : index
    %c0_1 = arith.constant 0 : index
    %0 = vector.load %arg2[%c0, %c0_0, %c0_1] : memref<1x256x128xbf16, #tpu.memory_space<vmem>>, vector<1x256x128xbf16>
    %1 = vector.shape_cast %0 : vector<1x256x128xbf16> to vector<256x128xbf16>
    %c0_2 = arith.constant 0 : index
    %c0_3 = arith.constant 0 : index
    %2 = vector.load %arg5[%c0_2, %c0_3] : memref<128x128xbf16, #tpu.memory_space<vmem>>, vector<128x128xbf16>
    %cst = arith.constant dense<0.000000e+00> : vector<256x128xf32>
    %3 = tpu.matmul %1, %2, %cst {dimension_numbers = #tpu.dot_dimension_numbers<[1], [0], [0], [1], [0, 0, 1, 1], [], []>} : vector<256x128xbf16>, vector<128x128xbf16>, vector<256x128xf32> -> vector<256x128xf32>
    %c0_4 = arith.constant 0 : index
    %c0_5 = arith.constant 0 : index
    %4 = vector.load %arg6[%c0_4, %c0_5] : memref<1x128xf32, #tpu.memory_space<vmem>>, vector<1x128xf32>
    %5 = vector.broadcast %4 : vector<1x128xf32> to vector<256x128xf32>
    %6 = arith.addf %3, %5 : vector<256x128xf32>
    %cst_6 = arith.constant 0.000000e+00 : f32
    %7 = vector.broadcast %cst_6 : f32 to vector<256x128xf32>
    %8 = arith.maximumf %6, %7 : vector<256x128xf32>
    %9 = arith.truncf %8 : vector<256x128xf32> to vector<256x128xbf16>
    %c0_7 = arith.constant 0 : index
    %c0_8 = arith.constant 0 : index
    %10 = vector.load %arg7[%c0_7, %c0_8] : memref<128x128xbf16, #tpu.memory_space<vmem>>, vector<128x128xbf16>
    %cst_9 = arith.constant dense<0.000000e+00> : vector<256x128xf32>
    %11 = tpu.matmul %9, %10, %cst_9 {dimension_numbers = #tpu.dot_dimension_numbers<[1], [0], [0], [1], [0, 0, 1, 1], [], []>} : vector<256x128xbf16>, vector<128x128xbf16>, vector<256x128xf32> -> vector<256x128xf32>
    %c0_10 = arith.constant 0 : index
    %c0_11 = arith.constant 0 : index
    %12 = vector.load %arg8[%c0_10, %c0_11] : memref<1x128xf32, #tpu.memory_space<vmem>>, vector<1x128xf32>
    %13 = vector.broadcast %12 : vector<1x128xf32> to vector<256x128xf32>
    %14 = arith.addf %11, %13 : vector<256x128xf32>
    %cst_12 = arith.constant 0.000000e+00 : f32
    %15 = vector.broadcast %cst_12 : f32 to vector<256x128xf32>
    %16 = arith.maximumf %14, %15 : vector<256x128xf32>
    %17 = arith.truncf %16 : vector<256x128xf32> to vector<256x128xbf16>
    %c0_13 = arith.constant 0 : index
    %c0_14 = arith.constant 0 : index
    %18 = vector.load %arg9[%c0_13, %c0_14] : memref<128x128xbf16, #tpu.memory_space<vmem>>, vector<128x128xbf16>
    %cst_15 = arith.constant dense<0.000000e+00> : vector<256x128xf32>
    %19 = tpu.matmul %17, %18, %cst_15 {dimension_numbers = #tpu.dot_dimension_numbers<[1], [0], [0], [1], [0, 0, 1, 1], [], []>} : vector<256x128xbf16>, vector<128x128xbf16>, vector<256x128xf32> -> vector<256x128xf32>
    %c0_16 = arith.constant 0 : index
    %c0_17 = arith.constant 0 : index
    %20 = vector.load %arg10[%c0_16, %c0_17] : memref<1x128xf32, #tpu.memory_space<vmem>>, vector<1x128xf32>
    %21 = vector.broadcast %20 : vector<1x128xf32> to vector<256x128xf32>
    %22 = arith.addf %19, %21 : vector<256x128xf32>
    %23 = arith.mulf %22, %22 : vector<256x128xf32>
    %cst_18 = arith.constant dense<0.000000e+00> : vector<256xf32>
    %24 = vector.multi_reduction <add>, %23, %cst_18 [1] : vector<256x128xf32> to vector<256xf32>
    %25 = vector.shape_cast %24 : vector<256xf32> to vector<256x1xf32>
    %26 = arith.truncf %22 : vector<256x128xf32> to vector<256x128xbf16>
    %c0_19 = arith.constant 0 : index
    %c0_20 = arith.constant 0 : index
    %c0_21 = arith.constant 0 : index
    %27 = vector.load %arg3[%c0_19, %c0_20, %c0_21] : memref<1x128x128xbf16, #tpu.memory_space<vmem>>, vector<1x128x128xbf16>
    %28 = vector.shape_cast %27 : vector<1x128x128xbf16> to vector<128x128xbf16>
    %cst_22 = arith.constant dense<0.000000e+00> : vector<256x128xf32>
    %29 = tpu.matmul %26, %28, %cst_22 {dimension_numbers = #tpu.dot_dimension_numbers<[1], [0], [0], [1], [0, 0, 1, 1], [], []>} : vector<256x128xbf16>, vector<128x128xbf16>, vector<256x128xf32> -> vector<256x128xf32>
    %cst_23 = arith.constant 1.000000e-03 : f32
    %30 = vector.broadcast %cst_23 : f32 to vector<256x128xf32>
    %31 = arith.mulf %30, %29 : vector<256x128xf32>
    %cst_24 = arith.constant 5.000000e-04 : f32
    %32 = vector.broadcast %cst_24 : f32 to vector<256x1xf32>
    %33 = arith.mulf %32, %25 : vector<256x1xf32>
    %34 = vector.broadcast %33 : vector<256x1xf32> to vector<256x128xf32>
    %35 = arith.subf %31, %34 : vector<256x128xf32>
    %c0_25 = arith.constant 0 : index
    %c0_26 = arith.constant 0 : index
    %c0_27 = arith.constant 0 : index
    %36 = vector.load %arg4[%c0_25, %c0_26, %c0_27] : memref<1x1x128xf32, #tpu.memory_space<vmem>>, vector<1x1x128xf32>
    %37 = vector.shape_cast %36 : vector<1x1x128xf32> to vector<1x128xf32>
    %cst_28 = arith.constant 5.000000e-04 : f32
    %38 = vector.broadcast %cst_28 : f32 to vector<1x128xf32>
    %39 = arith.mulf %38, %37 : vector<1x128xf32>
    %40 = vector.broadcast %39 : vector<1x128xf32> to vector<256x128xf32>
    %41 = arith.subf %35, %40 : vector<256x128xf32>
    %c0_29 = arith.constant 0 : index
    %c0_30 = arith.constant 0 : index
    %c0_31 = arith.constant 0 : index
    %c0_32 = arith.constant 0 : index
    %42 = vector.load %arg12[%c0_29, %c0_30, %c0_31, %c0_32] : memref<1x1x256x128xf32, #tpu.memory_space<vmem>>, vector<1x1x256x128xf32>
    %43 = vector.shape_cast %42 : vector<1x1x256x128xf32> to vector<256x128xf32>
    %44 = vector.shape_cast %41 : vector<256x128xf32> to vector<1x1x256x128xf32>
    tpu.vector_store %arg12[%c0_29, %c0_30, %c0_31, %c0_32], %44 {strides = array<i32>} : memref<1x1x256x128xf32, #tpu.memory_space<vmem>>, vector<1x1x256x128xf32>,
    %45 = tpu.iota {dimensions = array<i32: 1>} : vector<256x128xi32>
    %c40_i32 = arith.constant 40 : i32
    %46 = vector.broadcast %c40_i32 : i32 to vector<256x128xi32>
    %47 = arith.cmpi slt, %45, %46 : vector<256x128xi32>
    %cst_33 = arith.constant -1.000000e+30 : f32
    %48 = vector.broadcast %cst_33 : f32 to vector<256x128xf32>
    %49 = arith.select %47, %41, %48 : vector<256x128xi1>, vector<256x128xf32>
    %cst_34 = arith.constant dense<0xFF800000> : vector<256xf32>
    %50 = vector.multi_reduction <maximumf>, %49, %cst_34 [1] : vector<256x128xf32> to vector<256xf32>
    %51 = vector.shape_cast %50 : vector<256xf32> to vector<256x1xf32>
    %52 = vector.broadcast %51 : vector<256x1xf32> to vector<256x128xf32>
    %53 = arith.subf %49, %52 : vector<256x128xf32>
    %54 = math.exp %53 : vector<256x128xf32>
    %cst_35 = arith.constant dense<0.000000e+00> : vector<256xf32>
    %55 = vector.multi_reduction <add>, %54, %cst_35 [1] : vector<256x128xf32> to vector<256xf32>
    %56 = vector.shape_cast %55 : vector<256xf32> to vector<256x1xf32>
    %57 = tpu.reciprocal %56 {approx = true} : vector<256x1xf32> -> vector<256x1xf32>
    %58 = vector.broadcast %57 : vector<256x1xf32> to vector<256x128xf32>
    %59 = arith.mulf %54, %58 : vector<256x128xf32>
    %c0_36 = arith.constant 0 : index
    %c0_37 = arith.constant 0 : index
    %c0_38 = arith.constant 0 : index
    %c0_39 = arith.constant 0 : index
    %60 = vector.load %arg11[%c0_36, %c0_37, %c0_38, %c0_39] : memref<1x1x256x128xf32, #tpu.memory_space<vmem>>, vector<1x1x256x128xf32>
    %61 = vector.shape_cast %60 : vector<1x1x256x128xf32> to vector<256x128xf32>
    %62 = vector.shape_cast %59 : vector<256x128xf32> to vector<1x1x256x128xf32>
    tpu.vector_store %arg11[%c0_36, %c0_37, %c0_38, %c0_39], %62 {strides = array<i32>} : memref<1x1x256x128xf32, #tpu.memory_space<vmem>>, vector<1x1x256x128xf32>,
    return
  }
  func.func @transform_0(%arg0: i32, %arg1: i32) -> (i32, i32, i32) {
    %c0_i32 = arith.constant 0 : i32
    %c0_i32_0 = arith.constant 0 : i32
    return %arg0, %arg1, %c0_i32 : i32, i32, i32
  }
  func.func @transform_1(%arg0: i32, %arg1: i32) -> (i32, i32, i32) {
    %c0_i32 = arith.constant 0 : i32
    %c0_i32_0 = arith.constant 0 : i32
    %c0_i32_1 = arith.constant 0 : i32
    return %arg0, %c0_i32, %c0_i32_0 : i32, i32, i32
  }
  func.func @transform_2(%arg0: i32, %arg1: i32) -> (i32, i32, i32) {
    %c0_i32 = arith.constant 0 : i32
    %c0_i32_0 = arith.constant 0 : i32
    %c0_i32_1 = arith.constant 0 : i32
    return %arg0, %c0_i32, %c0_i32_0 : i32, i32, i32
  }
  func.func @transform_3(%arg0: i32, %arg1: i32) -> (i32, i32) {
    %c0_i32 = arith.constant 0 : i32
    %c0_i32_0 = arith.constant 0 : i32
    %c0_i32_1 = arith.constant 0 : i32
    return %c0_i32, %c0_i32_0 : i32, i32
  }
  func.func @transform_4(%arg0: i32, %arg1: i32) -> (i32, i32) {
    %c0_i32 = arith.constant 0 : i32
    %c0_i32_0 = arith.constant 0 : i32
    %c0_i32_1 = arith.constant 0 : i32
    return %c0_i32, %c0_i32_0 : i32, i32
  }
  func.func @transform_5(%arg0: i32, %arg1: i32) -> (i32, i32) {
    %c0_i32 = arith.constant 0 : i32
    %c0_i32_0 = arith.constant 0 : i32
    %c0_i32_1 = arith.constant 0 : i32
    return %c0_i32, %c0_i32_0 : i32, i32
  }
  func.func @transform_6(%arg0: i32, %arg1: i32) -> (i32, i32) {
    %c0_i32 = arith.constant 0 : i32
    %c0_i32_0 = arith.constant 0 : i32
    %c0_i32_1 = arith.constant 0 : i32
    return %c0_i32, %c0_i32_0 : i32, i32
  }
  func.func @transform_7(%arg0: i32, %arg1: i32) -> (i32, i32) {
    %c0_i32 = arith.constant 0 : i32
    %c0_i32_0 = arith.constant 0 : i32
    %c0_i32_1 = arith.constant 0 : i32
    return %c0_i32, %c0_i32_0 : i32, i32
  }
  func.func @transform_8(%arg0: i32, %arg1: i32) -> (i32, i32) {
    %c0_i32 = arith.constant 0 : i32
    %c0_i32_0 = arith.constant 0 : i32
    %c0_i32_1 = arith.constant 0 : i32
    return %c0_i32, %c0_i32_0 : i32, i32
  }
  func.func @transform_9(%arg0: i32, %arg1: i32) -> (i32, i32, i32, i32) {
    %c0_i32 = arith.constant 0 : i32
    %c0_i32_0 = arith.constant 0 : i32
    %c0_i32_1 = arith.constant 0 : i32
    return %arg0, %c0_i32, %arg1, %c0_i32_0 : i32, i32, i32, i32
  }
  func.func @transform_10(%arg0: i32, %arg1: i32) -> (i32, i32, i32, i32) {
    %c0_i32 = arith.constant 0 : i32
    %c0_i32_0 = arith.constant 0 : i32
    %c0_i32_1 = arith.constant 0 : i32
    return %arg0, %c0_i32, %arg1, %c0_i32_0 : i32, i32, i32, i32
  }
}

</mosaic_0001>

<llo_original>
// kernel: conv_attention_forward.2
$region0: #{conv_attention_forward.2}
  #allocation0 [shape = 'u32[]', space=smem, size = 0x4, offset = 0x4, fixed_abs, tag = 'smem constant byte address 0x4 - core index']
  #allocation1 [shape = 'u32[72,128]{1,0:T(1,128)}', space=vmem, size = 0x9000, scoped, tag = 'internal scratch']
  %s0 = inlined_call_operand.vmem [shape: bf16[2,128,128], index: 0, kind: input, shape index: {}]
  %s1 = inlined_call_operand.vmem [shape: bf16[128,128], index: 1, kind: input, shape index: {}]
  %s2 = inlined_call_operand.vmem [shape: f32[128,1], index: 2, kind: input, shape index: {}]
  %s3 = inlined_call_operand.vmem [shape: bf16[128,128], index: 3, kind: input, shape index: {}]
  %s4 = inlined_call_operand.vmem [shape: f32[128,1], index: 4, kind: input, shape index: {}]
  %s5 = inlined_call_operand.vmem [shape: bf16[2,128,128], index: 5, kind: output, shape index: {0}]
  %s6 = inlined_call_operand.vmem [shape: f32[2,1,128], index: 6, kind: output, shape index: {1}]
  %7 = xla_tuple %s5, %s6
  %s8 = sld [smem:[#allocation0]]
  $region61: #{conv_attention_forward.2} parent=0
    _
  %s10 = ssub.s32 1, %s8
  %s11 = scalar_select 0, %s10, %s8
  loop: start=0, step=1, limit=4
  $region2: #{conv_attention_forward.2} parent=0 // loop_pre_header
    _
  $region3: #{conv_attention_forward.2} parent=0 // loop_header
    %s13 = sphi 0, %s17
    %p14 = scmp.ge.s32.totalorder %s13, 4
    %s23 = sphi 0, %s25
    %s26 = sphi 0, %s23
    %s27 = sphi 0, %s26
    %s43 = sphi 0, %s27
    %s47 = sphi 0, %s47
    %s49 = sphi 0, %s47
    %s50 = sphi 0, %s49
    %s64 = sphi 0, %s50
    %s68 = sphi 0, %s68
    %s70 = sphi 0, %s68
    %s71 = sphi 0, %s70
    %s85 = sphi 0, %s71
    %s89 = sphi 0, %s89
    %s91 = sphi 0, %s89
    %s92 = sphi 0, %s91
    %s106 = sphi 0, %s92
    %s110 = sphi 0, %s110
    %s112 = sphi 0, %s110
    %s113 = sphi 0, %s112
    %s127 = sphi 0, %s113
    %s133 = sphi 0, %s135
    %s136 = sphi 0, %s133
    %s137 = sphi 0, %s136
    %s153 = sphi 0, %s137
    %s159 = sphi 0, %s161
    %s162 = sphi 0, %s159
    %s163 = sphi 0, %s162
    %s179 = sphi 0, %s163
  $region4: #{conv_attention_forward.2} parent=0 // loop_header_branch
    %16 = sbr.rel (%p14) target = $region8
  $region5: #{conv_attention_forward.2} parent=0 // loop_body
    %s18 = ssub.s32 %s13, 1
    %s19 = ssub.s32 %s13, 2
    %s20 = sadd.s32 %s13, 1
    %s21 = ssub.s32 %s13, %s20
    %p22 = scmp.eq.s32.totalorder %s21, 0
    %s24 = sadd.s32 %s23, 1
    %s25 = scalar_select %p22, %s23, %s24
    %p28 = pneg %p22
    %p29 = scmp.eq.s32.totalorder %s13, 1
    %p30 = por %p28, %p29
    %p31 = scmp.ne.s32.totalorder %s23, %s26
    %p32 = scmp.eq.s32.totalorder %s13, 0
    %p33 = por %p31, %p32
    %p34 = scmp.ne.s32.totalorder %s23, %s26
    %p35 = scmp.eq.s32.totalorder %s18, 1
    %p36 = por %p34, %p35
    %p37 = scmp.ne.s32.totalorder %s26, %s27
    %p38 = scmp.eq.s32.totalorder %s18, 0
    %p39 = por %p37, %p38
    %p40 = scmp.ne.s32.totalorder %s26, %s27
    %p41 = scmp.eq.s32.totalorder %s19, 1
    %p42 = por %p40, %p41
    %p44 = scmp.ne.s32.totalorder %s27, %s43
    %p45 = scmp.eq.s32.totalorder %s19, 0
    %p46 = por %p44, %p45
    %s48 = sadd.s32 %s47, 1
    %p51 = scmp.eq.s32.totalorder %s13, 1
    %p52 = scmp.ne.s32.totalorder %s47, %s49
    %p53 = scmp.eq.s32.totalorder %s13, 0
    %p54 = por %p52, %p53
    %p55 = scmp.ne.s32.totalorder %s47, %s49
    %p56 = scmp.eq.s32.totalorder %s18, 1
    %p57 = por %p55, %p56
    %p58 = scmp.ne.s32.totalorder %s49, %s50
    %p59 = scmp.eq.s32.totalorder %s18, 0
    %p60 = por %p58, %p59
    %p61 = scmp.ne.s32.totalorder %s49, %s50
    %p62 = scmp.eq.s32.totalorder %s19, 1
    %p63 = por %p61, %p62
    %p65 = scmp.ne.s32.totalorder %s50, %s64
    %p66 = scmp.eq.s32.totalorder %s19, 0
    %p67 = por %p65, %p66
    %s69 = sadd.s32 %s68, 1
    %p72 = scmp.eq.s32.totalorder %s13, 1
    %p73 = scmp.ne.s32.totalorder %s68, %s70
    %p74 = scmp.eq.s32.totalorder %s13, 0
    %p75 = por %p73, %p74
    %p76 = scmp.ne.s32.totalorder %s68, %s70
    %p77 = scmp.eq.s32.totalorder %s18, 1
    %p78 = por %p76, %p77
    %p79 = scmp.ne.s32.totalorder %s70, %s71
    %p80 = scmp.eq.s32.totalorder %s18, 0
    %p81 = por %p79, %p80
    %p82 = scmp.ne.s32.totalorder %s70, %s71
    %p83 = scmp.eq.s32.totalorder %s19, 1
    %p84 = por %p82, %p83
    %p86 = scmp.ne.s32.totalorder %s71, %s85
    %p87 = scmp.eq.s32.totalorder %s19, 0
    %p88 = por %p86, %p87
    %s90 = sadd.s32 %s89, 1
    %p93 = scmp.eq.s32.totalorder %s13, 1
    %p94 = scmp.ne.s32.totalorder %s89, %s91
    %p95 = scmp.eq.s32.totalorder %s13, 0
    %p96 = por %p94, %p95
    %p97 = scmp.ne.s32.totalorder %s89, %s91
    %p98 = scmp.eq.s32.totalorder %s18, 1
    %p99 = por %p97, %p98
    %p100 = scmp.ne.s32.totalorder %s91, %s92
    %p101 = scmp.eq.s32.totalorder %s18, 0
    %p102 = por %p100, %p101
    %p103 = scmp.ne.s32.totalorder %s91, %s92
    %p104 = scmp.eq.s32.totalorder %s19, 1
    %p105 = por %p103, %p104
    %p107 = scmp.ne.s32.totalorder %s92, %s106
    %p108 = scmp.eq.s32.totalorder %s19, 0
    %p109 = por %p107, %p108
    %s111 = sadd.s32 %s110, 1
    %p114 = scmp.eq.s32.totalorder %s13, 1
    %p115 = scmp.ne.s32.totalorder %s110, %s112
    %p116 = scmp.eq.s32.totalorder %s13, 0
    %p117 = por %p115, %p116
    %p118 = scmp.ne.s32.totalorder %s110, %s112
    %p119 = scmp.eq.s32.totalorder %s18, 1
    %p120 = por %p118, %p119
    %p121 = scmp.ne.s32.totalorder %s112, %s113
    %p122 = scmp.eq.s32.totalorder %s18, 0
    %p123 = por %p121, %p122
    %p124 = scmp.ne.s32.totalorder %s112, %s113
    %p125 = scmp.eq.s32.totalorder %s19, 1
    %p126 = por %p124, %p125
    %p128 = scmp.ne.s32.totalorder %s113, %s127
    %p129 = scmp.eq.s32.totalorder %s19, 0
    %p130 = por %p128, %p129
    %s131 = ssub.s32 %s13, %s20
    %p132 = scmp.eq.s32.totalorder %s131, 0
    %s134 = sadd.s32 %s133, 1
    %s135 = scalar_select %p132, %s133, %s134
    %p138 = pneg %p132
    %p139 = scmp.eq.s32.totalorder %s13, 1
    %p140 = por %p138, %p139
    %p141 = scmp.ne.s32.totalorder %s133, %s136
    %p142 = scmp.eq.s32.totalorder %s13, 0
    %p143 = por %p141, %p142
    %p144 = scmp.ne.s32.totalorder %s133, %s136
    %p145 = scmp.eq.s32.totalorder %s18, 1
    %p146 = por %p144, %p145
    %p147 = scmp.ne.s32.totalorder %s136, %s137
    %p148 = scmp.eq.s32.totalorder %s18, 0
    %p149 = por %p147, %p148
    %p150 = scmp.ne.s32.totalorder %s136, %s137
    %p151 = scmp.eq.s32.totalorder %s19, 1
    %p152 = por %p150, %p151
    %p154 = scmp.ne.s32.totalorder %s137, %s153
    %p155 = scmp.eq.s32.totalorder %s19, 0
    %p156 = por %p154, %p155
    %s157 = ssub.s32 %s13, %s20
    %p158 = scmp.eq.s32.totalorder %s157, 0
    %s160 = sadd.s32 %s159, 1
    %s161 = scalar_select %p158, %s159, %s160
    %p164 = pneg %p158
    %p165 = scmp.eq.s32.totalorder %s13, 1
    %p166 = por %p164, %p165
    %p167 = scmp.ne.s32.totalorder %s159, %s162
    %p168 = scmp.eq.s32.totalorder %s13, 0
    %p169 = por %p167, %p168
    %p170 = scmp.ne.s32.totalorder %s159, %s162
    %p171 = scmp.eq.s32.totalorder %s18, 1
    %p172 = por %p170, %p171
    %p173 = scmp.ne.s32.totalorder %s162, %s163
    %p174 = scmp.eq.s32.totalorder %s18, 0
    %p175 = por %p173, %p174
    %p176 = scmp.ne.s32.totalorder %s162, %s163
    %p177 = scmp.eq.s32.totalorder %s19, 1
    %p178 = por %p176, %p177
    %p180 = scmp.ne.s32.totalorder %s163, %s179
    %p181 = scmp.eq.s32.totalorder %s19, 0
    %p182 = por %p180, %p181
    %p183 = scmp.le.s32.totalorder 1, %s13
    %p184 = scmp.lt.s32.totalorder %s13, 3
    %p185 = pnand %p183, %p184
    %p186 = pneg %p185
    // Predicated region
    $region9: #{conv_attention_forward.2} parent=5 // pred_check
      _
    $region10: #{conv_attention_forward.2} parent=5 // pred_check_branch
      %188 = sbr.rel (%p185) target = $region12
    $region11: #{conv_attention_forward.2} parent=5 // pred_region
      %s189 = ssub.s32 %s13, 1
      // Predicated region
      $region13: #{conv_attention_forward.2} parent=11 // pred_check
        %p190 = pneg %p60
      $region14: #{conv_attention_forward.2} parent=11 // pred_check_branch
        %192 = sbr.rel (%p190) target = $region16
      $region15: #{conv_attention_forward.2} parent=11 // pred_region
        _
      $region16: #{conv_attention_forward.2} parent=11 // pred_fallthru
        _
      // Predicated region
      $region17: #{conv_attention_forward.2} parent=11 // pred_check
        %p193 = pneg %p81
      $region18: #{conv_attention_forward.2} parent=11 // pred_check_branch
        %195 = sbr.rel (%p193) target = $region20
      $region19: #{conv_attention_forward.2} parent=11 // pred_region
        _
      $region20: #{conv_attention_forward.2} parent=11 // pred_fallthru
        _
      // Predicated region
      $region21: #{conv_attention_forward.2} parent=11 // pred_check
        %p196 = pneg %p102
      $region22: #{conv_attention_forward.2} parent=11 // pred_check_branch
        %198 = sbr.rel (%p196) target = $region24
      $region23: #{conv_attention_forward.2} parent=11 // pred_region
        _
      $region24: #{conv_attention_forward.2} parent=11 // pred_fallthru
        _
      // Predicated region
      $region25: #{conv_attention_forward.2} parent=11 // pred_check
        %p199 = pneg %p123
      $region26: #{conv_attention_forward.2} parent=11 // pred_check_branch
        %201 = sbr.rel (%p199) target = $region28
      $region27: #{conv_attention_forward.2} parent=11 // pred_region
        _
      $region28: #{conv_attention_forward.2} parent=11 // pred_fallthru
        _
    $region12: #{conv_attention_forward.2} parent=5 // pred_fallthru
      _
    %p202 = scmp.lt.s32.totalorder %s13, 2
    // Predicated region
    $region29: #{conv_attention_forward.2} parent=5 // pred_check
      %p203 = pneg %p202
    $region30: #{conv_attention_forward.2} parent=5 // pred_check_branch
      %205 = sbr.rel (%p203) target = $region32
    $region31: #{conv_attention_forward.2} parent=5 // pred_region
      // Predicated region
      $region33: #{conv_attention_forward.2} parent=31 // pred_check
        %p206 = pneg %p33
      $region34: #{conv_attention_forward.2} parent=31 // pred_check_branch
        %208 = sbr.rel (%p206) target = $region36
      $region35: #{conv_attention_forward.2} parent=31 // pred_region
        %p209 = scmp.lt.s32.totalorder %s13, 1
        %s210 = scalar_select %p209, %s13, 1
        %s211 = smul.addr %s210, 16
        %s212 = smul.addr %s211, 4
        %s213 = scalar_lea.vmem %s0, %s212
      $region36: #{conv_attention_forward.2} parent=31 // pred_fallthru
        _
    $region32: #{conv_attention_forward.2} parent=5 // pred_fallthru
      _
    %p214 = scmp.le.s32.totalorder 1, %s13
    %p215 = scmp.lt.s32.totalorder %s13, 3
    %p216 = pnand %p214, %p215
    %p217 = pneg %p216
    // Predicated region
    $region37: #{conv_attention_forward.2} parent=5 // pred_check
      _
    $region38: #{conv_attention_forward.2} parent=5 // pred_check_branch
      %219 = sbr.rel (%p216) target = $region40
    $region39: #{conv_attention_forward.2} parent=5 // pred_region
      %s220 = ssub.s32 %s13, 1
      %p221 = scmp.lt.s32.totalorder %s18, 1
      %s222 = scalar_select %p221, %s18, 1
      %s223 = smul.addr %s222, 16
      %s224 = smul.addr %s223, 4
      %s225 = scalar_lea.vmem %s0, %s224
      %p226 = pneg %p39
      %p227 = pneg %p36
      %p228 = pneg %p60
      %p229 = pneg %p57
      %p230 = pneg %p81
      %p231 = pneg %p78
      %p232 = pneg %p102
      %p233 = pneg %p99
      %p234 = pneg %p123
      %p235 = pneg %p120
      %p236 = pneg %p149
      %p237 = pneg %p146
      %p238 = scmp.lt.s32.totalorder %s18, 1
      %s239 = scalar_select %p238, %s18, 1
      %s240 = smul.addr %s239, 16
      %s241 = smul.addr %s240, 4
      %s242 = scalar_lea.vmem %s5, %s241
      %p243 = pneg %p175
      %p244 = pneg %p172
      %p245 = scmp.lt.s32.totalorder %s18, 1
      %s246 = scalar_select %p245, %s18, 1
      %s247 = scalar_lea.vmem %s6, %s246
      %p248 = scmp.lt.s32.totalorder %s18, 1
      %s249 = scalar_select %p248, %s18, 1
      %s250 = smul.addr %s249, 16
      %s251 = smul.addr %s250, 4
      %s252 = scalar_lea.vmem %s0, %s251
      %p253 = scmp.lt.s32.totalorder %s18, 1
      %s254 = scalar_select %p253, %s18, 1
      %s255 = smul.addr %s254, 16
      %s256 = smul.addr %s255, 4
      %s257 = scalar_lea.vmem %s5, %s256
      %p258 = scmp.lt.s32.totalorder %s18, 1
      %s259 = scalar_select %p258, %s18, 1
      %s260 = scalar_lea.vmem %s6, %s259
      %v261 = vld [vmem:[%s1] sm:$0xf]
      %v262 = vld [vmem:[%s1 + $0x4] sm:$0xf]
      %v263 = vld [vmem:[%s1 + $0x8] sm:$0xf]
      %v264 = vld [vmem:[%s1 + $0xc] sm:$0xf]
      %v265 = vld [vmem:[%s1 + $0x10] sm:$0xf]
      %v266 = vld [vmem:[%s1 + $0x14] sm:$0xf]
      %v267 = vld [vmem:[%s1 + $0x18] sm:$0xf]
      %v268 = vld [vmem:[%s1 + $0x1c] sm:$0xf]
      %v269 = vld [vmem:[%s1 + $0x20] sm:$0xf]
      %v270 = vld [vmem:[%s1 + $0x24] sm:$0xf]
      %v271 = vld [vmem:[%s1 + $0x28] sm:$0xf]
      %v272 = vld [vmem:[%s1 + $0x2c] sm:$0xf]
      %v273 = vld [vmem:[%s1 + $0x30] sm:$0xf]
      %v274 = vld [vmem:[%s1 + $0x34] sm:$0xf]
      %v275 = vld [vmem:[%s1 + $0x38] sm:$0xf]
      %v276 = vld [vmem:[%s1 + $0x3c] sm:$0xf]
      %v277 = vld [vmem:[%s252] sm:$0xf]
      %v278 = vld [vmem:[%s252 + $0x4] sm:$0xf]
      %v279 = vld [vmem:[%s252 + $0x8] sm:$0xf]
      %v280 = vld [vmem:[%s252 + $0xc] sm:$0xf]
      %v281 = vld [vmem:[%s252 + $0x10] sm:$0xf]
      %v282 = vld [vmem:[%s252 + $0x14] sm:$0xf]
      %v283 = vld [vmem:[%s252 + $0x18] sm:$0xf]
      %v284 = vld [vmem:[%s252 + $0x1c] sm:$0xf]
      %v285 = vld [vmem:[%s252 + $0x20] sm:$0xf]
      %v286 = vld [vmem:[%s252 + $0x24] sm:$0xf]
      %v287 = vld [vmem:[%s252 + $0x28] sm:$0xf]
      %v288 = vld [vmem:[%s252 + $0x2c] sm:$0xf]
      %v289 = vld [vmem:[%s252 + $0x30] sm:$0xf]
      %v290 = vld [vmem:[%s252 + $0x34] sm:$0xf]
      %v291 = vld [vmem:[%s252 + $0x38] sm:$0xf]
      %v292 = vld [vmem:[%s252 + $0x3c] sm:$0xf]
      %v293 = vld [vmem:[%s2] sm:$0xff]
      %v294 = vld [vmem:[%s2 + $0x8] sm:$0xff]
      %v295 = vld [vmem:[%s2 + $0x10] sm:$0xff]
      %v296 = vld [vmem:[%s2 + $0x18] sm:$0xff]
      %v297 = vld [vmem:[%s2 + $0x20] sm:$0xff]
      %v298 = vld [vmem:[%s2 + $0x28] sm:$0xff]
      %v299 = vld [vmem:[%s2 + $0x30] sm:$0xff]
      %v300 = vld [vmem:[%s2 + $0x38] sm:$0xff]
      %v301 = vld [vmem:[%s2 + $0x40] sm:$0xff]
      %v302 = vld [vmem:[%s2 + $0x48] sm:$0xff]
      %v303 = vld [vmem:[%s2 + $0x50] sm:$0xff]
      %v304 = vld [vmem:[%s2 + $0x58] sm:$0xff]
      %v305 = vld [vmem:[%s2 + $0x60] sm:$0xff]
      %v306 = vld [vmem:[%s2 + $0x68] sm:$0xff]
      %v307 = vld [vmem:[%s2 + $0x70] sm:$0xff]
      %v308 = vld [vmem:[%s2 + $0x78] sm:$0xff]
      %310 = vset.pattern.permute.xlu0 0
      %311 = vperm.xlu0 %310, %v293
      %v312 = vpop.permute.xlu0 %311
      %315 = vset.pattern.permute.xlu0 0
      %316 = vperm.xlu0 %315, %v294
      %v317 = vpop.permute.xlu0 %316
      %320 = vset.pattern.permute.xlu0 0
      %321 = vperm.xlu0 %320, %v295
      %v322 = vpop.permute.xlu0 %321
      %325 = vset.pattern.permute.xlu0 0
      %326 = vperm.xlu0 %325, %v296
      %v327 = vpop.permute.xlu0 %326
      %330 = vset.pattern.permute.xlu0 0
      %331 = vperm.xlu0 %330, %v297
      %v332 = vpop.permute.xlu0 %331
      %335 = vset.pattern.permute.xlu0 0
      %336 = vperm.xlu0 %335, %v298
      %v337 = vpop.permute.xlu0 %336
      %340 = vset.pattern.permute.xlu0 0
      %341 = vperm.xlu0 %340, %v299
      %v342 = vpop.permute.xlu0 %341
      %345 = vset.pattern.permute.xlu0 0
      %346 = vperm.xlu0 %345, %v300
      %v347 = vpop.permute.xlu0 %346
      %350 = vset.pattern.permute.xlu0 0
      %351 = vperm.xlu0 %350, %v301
      %v352 = vpop.permute.xlu0 %351
      %355 = vset.pattern.permute.xlu0 0
      %356 = vperm.xlu0 %355, %v302
      %v357 = vpop.permute.xlu0 %356
      %360 = vset.pattern.permute.xlu0 0
      %361 = vperm.xlu0 %360, %v303
      %v362 = vpop.permute.xlu0 %361
      %365 = vset.pattern.permute.xlu0 0
      %366 = vperm.xlu0 %365, %v304
      %v367 = vpop.permute.xlu0 %366
      %370 = vset.pattern.permute.xlu0 0
      %371 = vperm.xlu0 %370, %v305
      %v372 = vpop.permute.xlu0 %371
      %375 = vset.pattern.permute.xlu0 0
      %376 = vperm.xlu0 %375, %v306
      %v377 = vpop.permute.xlu0 %376
      %380 = vset.pattern.permute.xlu0 0
      %381 = vperm.xlu0 %380, %v307
      %v382 = vpop.permute.xlu0 %381
      %385 = vset.pattern.permute.xlu0 0
      %386 = vperm.xlu0 %385, %v308
      %v387 = vpop.permute.xlu0 %386
      %v405 = vunpack.c.l.b16 %v261
      %v406 = vunpack.c.l.b16 %v262
      %v407 = vunpack.c.l.b16 %v263
      %v408 = vunpack.c.l.b16 %v264
      %v409 = vunpack.c.l.b16 %v265
      %v410 = vunpack.c.l.b16 %v266
      %v411 = vunpack.c.l.b16 %v267
      %v412 = vunpack.c.l.b16 %v268
      %v413 = vunpack.c.l.b16 %v269
      %v414 = vunpack.c.l.b16 %v270
      %v415 = vunpack.c.l.b16 %v271
      %v416 = vunpack.c.l.b16 %v272
      %v417 = vunpack.c.l.b16 %v273
      %v418 = vunpack.c.l.b16 %v274
      %v419 = vunpack.c.l.b16 %v275
      %v420 = vunpack.c.l.b16 %v276
      %v421 = vpack.c.b16 %v406, %v405
      %v422 = vpack.c.b16 %v408, %v407
      %v423 = vpack.c.b16 %v410, %v409
      %v424 = vpack.c.b16 %v412, %v411
      %v425 = vpack.c.b16 %v414, %v413
      %v426 = vpack.c.b16 %v416, %v415
      %v427 = vpack.c.b16 %v418, %v417
      %v428 = vpack.c.b16 %v420, %v419
      %v453 = vunpack.c.l.b16 %v277
      %v454 = vunpack.c.l.b16 %v278
      %v455 = vunpack.c.l.b16 %v279
      %v456 = vunpack.c.l.b16 %v280
      %v457 = vunpack.c.l.b16 %v281
      %v458 = vunpack.c.l.b16 %v282
      %v459 = vunpack.c.l.b16 %v283
      %v460 = vunpack.c.l.b16 %v284
      %v461 = vunpack.c.l.b16 %v285
      %v462 = vunpack.c.l.b16 %v286
      %v463 = vunpack.c.l.b16 %v287
      %v464 = vunpack.c.l.b16 %v288
      %v465 = vunpack.c.l.b16 %v289
      %v466 = vunpack.c.l.b16 %v290
      %v467 = vunpack.c.l.b16 %v291
      %v468 = vunpack.c.l.b16 %v292
      %v469 = vpack.c.b16 %v454, %v453
      %v470 = vpack.c.b16 %v456, %v455
      %v471 = vpack.c.b16 %v458, %v457
      %v472 = vpack.c.b16 %v460, %v459
      %v473 = vpack.c.b16 %v462, %v461
      %v474 = vpack.c.b16 %v464, %v463
      %v475 = vpack.c.b16 %v466, %v465
      %v476 = vpack.c.b16 %v468, %v467
      %485 = vmatpush.bf16.msra.mxu0 %v476
      %486 = vmatpush.bf16.msra.mxu0 %v475
      %487 = vmatpush.bf16.msra.mxu0 %v474
      %488 = vmatpush.bf16.msra.mxu0 %v473
      %489 = vmatpush.bf16.msra.mxu0 %v472
      %490 = vmatpush.bf16.msra.mxu0 %v471
      %491 = vmatpush.bf16.msra.mxu0 %v470
      %492 = vmatpush.bf16.msra.mxu0 %v469
      %493 = vmatmul.bf16.gmra.mxu0 %v421
      %v494 = vpop.f32.mrf.mxu0
      %v495 = vadd.f32 %v312, %v494
      %v496 = vpop.f32.mrf.mxu0
      %v497 = vadd.f32 %v317, %v496
      %498 = vmatmul.bf16.gmra.mxu0 %v422
      %v499 = vpop.f32.mrf.mxu0
      %v500 = vadd.f32 %v322, %v499
      %v501 = vpop.f32.mrf.mxu0
      %v502 = vadd.f32 %v327, %v501
      %503 = vmatmul.bf16.gmra.mxu0 %v423
      %v504 = vpop.f32.mrf.mxu0
      %v505 = vadd.f32 %v332, %v504
      %v506 = vpop.f32.mrf.mxu0
      %v507 = vadd.f32 %v337, %v506
      %508 = vmatmul.bf16.gmra.mxu0 %v424
      %v509 = vpop.f32.mrf.mxu0
      %v510 = vadd.f32 %v342, %v509
      %v511 = vpop.f32.mrf.mxu0
      %v512 = vadd.f32 %v347, %v511
      %513 = vmatmul.bf16.gmra.mxu0 %v425
      %v514 = vpop.f32.mrf.mxu0
      %v515 = vadd.f32 %v352, %v514
      %v516 = vpop.f32.mrf.mxu0
      %v517 = vadd.f32 %v357, %v516
      %518 = vmatmul.bf16.gmra.mxu0 %v426
      %v519 = vpop.f32.mrf.mxu0
      %v520 = vadd.f32 %v362, %v519
      %v521 = vpop.f32.mrf.mxu0
      %v522 = vadd.f32 %v367, %v521
      %523 = vmatmul.bf16.gmra.mxu0 %v427
      %v524 = vpop.f32.mrf.mxu0
      %v525 = vadd.f32 %v372, %v524
      %v526 = vpop.f32.mrf.mxu0
      %v527 = vadd.f32 %v377, %v526
      %528 = vmatmul.bf16.gmra.mxu0 %v428
      %v529 = vpop.f32.mrf.mxu0
      %v530 = vadd.f32 %v382, %v529
      %v531 = vpop.f32.mrf.mxu0
      %v532 = vadd.f32 %v387, %v531
      %533 = vdwg.mxu0
      %v534 = vmax.f32 %v495, 0.0
      %v535 = vmax.f32 %v497, 0.0
      %v536 = vmax.f32 %v500, 0.0
      %v537 = vmax.f32 %v502, 0.0
      %v538 = vmax.f32 %v505, 0.0
      %v539 = vmax.f32 %v507, 0.0
      %v540 = vmax.f32 %v510, 0.0
      %v541 = vmax.f32 %v512, 0.0
      %v542 = vmax.f32 %v515, 0.0
      %v543 = vmax.f32 %v517, 0.0
      %v544 = vmax.f32 %v520, 0.0
      %v545 = vmax.f32 %v522, 0.0
      %v546 = vmax.f32 %v525, 0.0
      %v547 = vmax.f32 %v527, 0.0
      %v548 = vmax.f32 %v530, 0.0
      %v549 = vmax.f32 %v532, 0.0
      %v550 = vld [vmem:[%s3] sm:$0xf]
      %v551 = vld [vmem:[%s3 + $0x4] sm:$0xf]
      %v552 = vld [vmem:[%s3 + $0x8] sm:$0xf]
      %v553 = vld [vmem:[%s3 + $0xc] sm:$0xf]
      %v554 = vld [vmem:[%s3 + $0x10] sm:$0xf]
      %v555 = vld [vmem:[%s3 + $0x14] sm:$0xf]
      %v556 = vld [vmem:[%s3 + $0x18] sm:$0xf]
      %v557 = vld [vmem:[%s3 + $0x1c] sm:$0xf]
      %v558 = vld [vmem:[%s3 + $0x20] sm:$0xf]
      %v559 = vld [vmem:[%s3 + $0x24] sm:$0xf]
      %v560 = vld [vmem:[%s3 + $0x28] sm:$0xf]
      %v561 = vld [vmem:[%s3 + $0x2c] sm:$0xf]
      %v562 = vld [vmem:[%s3 + $0x30] sm:$0xf]
      %v563 = vld [vmem:[%s3 + $0x34] sm:$0xf]
      %v564 = vld [vmem:[%s3 + $0x38] sm:$0xf]
      %v565 = vld [vmem:[%s3 + $0x3c] sm:$0xf]
      %v566 = vpack.c.bf16 %v535, %v534
      %v567 = vpack.c.bf16 %v537, %v536
      %v568 = vpack.c.bf16 %v539, %v538
      %v569 = vpack.c.bf16 %v541, %v540
      %v570 = vpack.c.bf16 %v543, %v542
      %v571 = vpack.c.bf16 %v545, %v544
      %v572 = vpack.c.bf16 %v547, %v546
      %v573 = vpack.c.bf16 %v549, %v548
      %v574 = vld [vmem:[%s4] sm:$0xff]
      %v575 = vld [vmem:[%s4 + $0x8] sm:$0xff]
      %v576 = vld [vmem:[%s4 + $0x10] sm:$0xff]
      %v577 = vld [vmem:[%s4 + $0x18] sm:$0xff]
      %v578 = vld [vmem:[%s4 + $0x20] sm:$0xff]
      %v579 = vld [vmem:[%s4 + $0x28] sm:$0xff]
      %v580 = vld [vmem:[%s4 + $0x30] sm:$0xff]
      %v581 = vld [vmem:[%s4 + $0x38] sm:$0xff]
      %v582 = vld [vmem:[%s4 + $0x40] sm:$0xff]
      %v583 = vld [vmem:[%s4 + $0x48] sm:$0xff]
      %v584 = vld [vmem:[%s4 + $0x50] sm:$0xff]
      %v585 = vld [vmem:[%s4 + $0x58] sm:$0xff]
      %v586 = vld [vmem:[%s4 + $0x60] sm:$0xff]
      %v587 = vld [vmem:[%s4 + $0x68] sm:$0xff]
      %v588 = vld [vmem:[%s4 + $0x70] sm:$0xff]
      %v589 = vld [vmem:[%s4 + $0x78] sm:$0xff]
      %591 = vset.pattern.permute.xlu0 0
      %592 = vperm.xlu0 %591, %v574
      %v593 = vpop.permute.xlu0 %592
      %596 = vset.pattern.permute.xlu0 0
      %597 = vperm.xlu0 %596, %v575
      %v598 = vpop.permute.xlu0 %597
      %601 = vset.pattern.permute.xlu0 0
      %602 = vperm.xlu0 %601, %v576
      %v603 = vpop.permute.xlu0 %602
      %606 = vset.pattern.permute.xlu0 0
      %607 = vperm.xlu0 %606, %v577
      %v608 = vpop.permute.xlu0 %607
      %611 = vset.pattern.permute.xlu0 0
      %612 = vperm.xlu0 %611, %v578
      %v613 = vpop.permute.xlu0 %612
      %616 = vset.pattern.permute.xlu0 0
      %617 = vperm.xlu0 %616, %v579
      %v618 = vpop.permute.xlu0 %617
      %621 = vset.pattern.permute.xlu0 0
      %622 = vperm.xlu0 %621, %v580
      %v623 = vpop.permute.xlu0 %622
      %626 = vset.pattern.permute.xlu0 0
      %627 = vperm.xlu0 %626, %v581
      %v628 = vpop.permute.xlu0 %627
      %631 = vset.pattern.permute.xlu0 0
      %632 = vperm.xlu0 %631, %v582
      %v633 = vpop.permute.xlu0 %632
      %636 = vset.pattern.permute.xlu0 0
      %637 = vperm.xlu0 %636, %v583
      %v638 = vpop.permute.xlu0 %637
      %641 = vset.pattern.permute.xlu0 0
      %642 = vperm.xlu0 %641, %v584
      %v643 = vpop.permute.xlu0 %642
      %646 = vset.pattern.permute.xlu0 0
      %647 = vperm.xlu0 %646, %v585
      %v648 = vpop.permute.xlu0 %647
      %651 = vset.pattern.permute.xlu0 0
      %652 = vperm.xlu0 %651, %v586
      %v653 = vpop.permute.xlu0 %652
      %656 = vset.pattern.permute.xlu0 0
      %657 = vperm.xlu0 %656, %v587
      %v658 = vpop.permute.xlu0 %657
      %661 = vset.pattern.permute.xlu0 0
      %662 = vperm.xlu0 %661, %v588
      %v663 = vpop.permute.xlu0 %662
      %666 = vset.pattern.permute.xlu0 0
      %667 = vperm.xlu0 %666, %v589
      %v668 = vpop.permute.xlu0 %667
      %v686 = vunpack.c.l.b16 %v550
      %v687 = vunpack.c.l.b16 %v551
      %v688 = vunpack.c.l.b16 %v552
      %v689 = vunpack.c.l.b16 %v553
      %v690 = vunpack.c.l.b16 %v554
      %v691 = vunpack.c.l.b16 %v555
      %v692 = vunpack.c.l.b16 %v556
      %v693 = vunpack.c.l.b16 %v557
      %v694 = vunpack.c.l.b16 %v558
      %v695 = vunpack.c.l.b16 %v559
      %v696 = vunpack.c.l.b16 %v560
      %v697 = vunpack.c.l.b16 %v561
      %v698 = vunpack.c.l.b16 %v562
      %v699 = vunpack.c.l.b16 %v563
      %v700 = vunpack.c.l.b16 %v564
      %v701 = vunpack.c.l.b16 %v565
      %v702 = vpack.c.b16 %v687, %v686
      %v703 = vpack.c.b16 %v689, %v688
      %v704 = vpack.c.b16 %v691, %v690
      %v705 = vpack.c.b16 %v693, %v692
      %v706 = vpack.c.b16 %v695, %v694
      %v707 = vpack.c.b16 %v697, %v696
      %v708 = vpack.c.b16 %v699, %v698
      %v709 = vpack.c.b16 %v701, %v700
      %718 = vmatpush.bf16.msra.mxu0 %v573
      %719 = vmatpush.bf16.msra.mxu0 %v572
      %720 = vmatpush.bf16.msra.mxu0 %v571
      %721 = vmatpush.bf16.msra.mxu0 %v570
      %722 = vmatpush.bf16.msra.mxu0 %v569
      %723 = vmatpush.bf16.msra.mxu0 %v568
      %724 = vmatpush.bf16.msra.mxu0 %v567
      %725 = vmatpush.bf16.msra.mxu0 %v566
      %726 = vmatmul.bf16.gmra.mxu0 %v702
      %v727 = vpop.f32.mrf.mxu0
      %v728 = vadd.f32 %v593, %v727
      %v729 = vpop.f32.mrf.mxu0
      %v730 = vadd.f32 %v598, %v729
      %731 = vmatmul.bf16.gmra.mxu0 %v703
      %v732 = vpop.f32.mrf.mxu0
      %v733 = vadd.f32 %v603, %v732
      %v734 = vpop.f32.mrf.mxu0
      %v735 = vadd.f32 %v608, %v734
      %736 = vmatmul.bf16.gmra.mxu0 %v704
      %v737 = vpop.f32.mrf.mxu0
      %v738 = vadd.f32 %v613, %v737
      %v739 = vpop.f32.mrf.mxu0
      %v740 = vadd.f32 %v618, %v739
      %741 = vmatmul.bf16.gmra.mxu0 %v705
      %v742 = vpop.f32.mrf.mxu0
      %v743 = vadd.f32 %v623, %v742
      %v744 = vpop.f32.mrf.mxu0
      %v745 = vadd.f32 %v628, %v744
      %746 = vmatmul.bf16.gmra.mxu0 %v706
      %v747 = vpop.f32.mrf.mxu0
      %v748 = vadd.f32 %v633, %v747
      %v749 = vpop.f32.mrf.mxu0
      %v750 = vadd.f32 %v638, %v749
      %751 = vmatmul.bf16.gmra.mxu0 %v707
      %v752 = vpop.f32.mrf.mxu0
      %v753 = vadd.f32 %v643, %v752
      %v754 = vpop.f32.mrf.mxu0
      %v755 = vadd.f32 %v648, %v754
      %756 = vmatmul.bf16.gmra.mxu0 %v708
      %v757 = vpop.f32.mrf.mxu0
      %v758 = vadd.f32 %v653, %v757
      %v759 = vpop.f32.mrf.mxu0
      %v760 = vadd.f32 %v658, %v759
      %761 = vmatmul.bf16.gmra.mxu0 %v709
      %v762 = vpop.f32.mrf.mxu0
      %v763 = vadd.f32 %v663, %v762
      %v764 = vpop.f32.mrf.mxu0
      %v765 = vadd.f32 %v668, %v764
      %766 = vdwg.mxu0
      %v767 = vpack.c.bf16 %v728, %v728
      %v768 = vpack.c.bf16 %v730, %v730
      %v769 = vpack.c.bf16 %v733, %v733
      %v770 = vpack.c.bf16 %v735, %v735
      %v771 = vpack.c.bf16 %v738, %v738
      %v772 = vpack.c.bf16 %v740, %v740
      %v773 = vpack.c.bf16 %v743, %v743
      %v774 = vpack.c.bf16 %v745, %v745
      %v775 = vpack.c.bf16 %v748, %v748
      %v776 = vpack.c.bf16 %v750, %v750
      %v777 = vpack.c.bf16 %v753, %v753
      %v778 = vpack.c.bf16 %v755, %v755
      %v779 = vpack.c.bf16 %v758, %v758
      %v780 = vpack.c.bf16 %v760, %v760
      %v781 = vpack.c.bf16 %v763, %v763
      %v782 = vpack.c.bf16 %v765, %v765
      %783 = vst [vmem:[%s257] sm:$0xf] %v767
      %784 = vst [vmem:[%s257 + $0x4] sm:$0xf] %v768
      %785 = vst [vmem:[%s257 + $0x8] sm:$0xf] %v769
      %786 = vst [vmem:[%s257 + $0xc] sm:$0xf] %v770
      %787 = vst [vmem:[%s257 + $0x10] sm:$0xf] %v771
      %788 = vst [vmem:[%s257 + $0x14] sm:$0xf] %v772
      %789 = vst [vmem:[%s257 + $0x18] sm:$0xf] %v773
      %790 = vst [vmem:[%s257 + $0x1c] sm:$0xf] %v774
      %791 = vst [vmem:[%s257 + $0x20] sm:$0xf] %v775
      %792 = vst [vmem:[%s257 + $0x24] sm:$0xf] %v776
      %793 = vst [vmem:[%s257 + $0x28] sm:$0xf] %v777
      %794 = vst [vmem:[%s257 + $0x2c] sm:$0xf] %v778
      %795 = vst [vmem:[%s257 + $0x30] sm:$0xf] %v779
      %796 = vst [vmem:[%s257 + $0x34] sm:$0xf] %v780
      %797 = vst [vmem:[%s257 + $0x38] sm:$0xf] %v781
      %798 = vst [vmem:[%s257 + $0x3c] sm:$0xf] %v782
      %v799 = vmul.f32 %v728, %v728
      %v800 = vmul.f32 %v730, %v730
      %v801 = vmul.f32 %v733, %v733
      %v802 = vmul.f32 %v735, %v735
      %v803 = vmul.f32 %v738, %v738
      %v804 = vmul.f32 %v740, %v740
      %v805 = vmul.f32 %v743, %v743
      %v806 = vmul.f32 %v745, %v745
      %v807 = vmul.f32 %v748, %v748
      %v808 = vmul.f32 %v750, %v750
      %v809 = vmul.f32 %v753, %v753
      %v810 = vmul.f32 %v755, %v755
      %v811 = vmul.f32 %v758, %v758
      %v812 = vmul.f32 %v760, %v760
      %v813 = vmul.f32 %v763, %v763
      %v814 = vmul.f32 %v765, %v765
      %v815 = vadd.f32 %v799, %v800
      %v816 = vadd.f32 %v815, %v801
      %v817 = vadd.f32 %v816, %v802
      %v818 = vadd.f32 %v817, %v803
      %v819 = vadd.f32 %v818, %v804
      %v820 = vadd.f32 %v819, %v805
      %v821 = vadd.f32 %v820, %v806
      %v822 = vadd.f32 %v821, %v807
      %v823 = vadd.f32 %v822, %v808
      %v824 = vadd.f32 %v823, %v809
      %v825 = vadd.f32 %v824, %v810
      %v826 = vadd.f32 %v825, %v811
      %v827 = vadd.f32 %v826, %v812
      %v828 = vadd.f32 %v827, %v813
      %v829 = vadd.f32 %v828, %v814
      %v830 = vrot.slane %v829, 4
      %v831 = vadd.f32 %v829, %v830
      %v832 = vrot.slane %v831, 2
      %v833 = vadd.f32 %v831, %v832
      %v834 = vrot.slane %v833, 1
      %v835 = vadd.f32 %v833, %v834
      %836 = vst [vmem:[%s260] sm:$0x1] %v835
      %p837 = scmp.lt.s32.totalorder %s18, 1
      %s838 = scalar_select %p837, %s18, 1
      %s839 = smul.addr %s838, 16
      %s840 = smul.addr %s839, 4
      %s841 = scalar_lea.vmem %s5, %s840
      %p842 = scmp.lt.s32.totalorder %s18, 1
      %s843 = scalar_select %p842, %s18, 1
      %s844 = scalar_lea.vmem %s6, %s843
      // Predicated region
      $region41: #{conv_attention_forward.2} parent=39 // pred_check
        %p845 = pneg %p146
      $region42: #{conv_attention_forward.2} parent=39 // pred_check_branch
        %847 = sbr.rel (%p845) target = $region44
      $region43: #{conv_attention_forward.2} parent=39 // pred_region
        _
      $region44: #{conv_attention_forward.2} parent=39 // pred_fallthru
        _
      // Predicated region
      $region45: #{conv_attention_forward.2} parent=39 // pred_check
        %p848 = pneg %p172
      $region46: #{conv_attention_forward.2} parent=39 // pred_check_branch
        %850 = sbr.rel (%p848) target = $region48
      $region47: #{conv_attention_forward.2} parent=39 // pred_region
        _
      $region48: #{conv_attention_forward.2} parent=39 // pred_fallthru
        _
    $region40: #{conv_attention_forward.2} parent=5 // pred_fallthru
      _
    %p851 = scmp.le.s32.totalorder 2, %s13
    // Predicated region
    $region49: #{conv_attention_forward.2} parent=5 // pred_check
      %p852 = pneg %p851
    $region50: #{conv_attention_forward.2} parent=5 // pred_check_branch
      %854 = sbr.rel (%p852) target = $region52
    $region51: #{conv_attention_forward.2} parent=5 // pred_region
      %s855 = ssub.s32 %s13, 2
      // Predicated region
      $region53: #{conv_attention_forward.2} parent=51 // pred_check
        %p856 = pneg %p152
      $region54: #{conv_attention_forward.2} parent=51 // pred_check_branch
        %858 = sbr.rel (%p856) target = $region56
      $region55: #{conv_attention_forward.2} parent=51 // pred_region
        %p859 = scmp.lt.s32.totalorder %s19, 1
        %s860 = scalar_select %p859, %s19, 1
        %s861 = smul.addr %s860, 16
        %s862 = smul.addr %s861, 4
        %s863 = scalar_lea.vmem %s5, %s862
      $region56: #{conv_attention_forward.2} parent=51 // pred_fallthru
        _
      // Predicated region
      $region57: #{conv_attention_forward.2} parent=51 // pred_check
        %p864 = pneg %p178
      $region58: #{conv_attention_forward.2} parent=51 // pred_check_branch
        %866 = sbr.rel (%p864) target = $region60
      $region59: #{conv_attention_forward.2} parent=51 // pred_region
        %p867 = scmp.lt.s32.totalorder %s19, 1
        %s868 = scalar_select %p867, %s19, 1
        %s869 = scalar_lea.vmem %s6, %s868
      $region60: #{conv_attention_forward.2} parent=51 // pred_fallthru
        _
    $region52: #{conv_attention_forward.2} parent=5 // pred_fallthru
      _
  $region6: #{conv_attention_forward.2} parent=0 // loop_footer
    %s17 = sadd.s32 1, %s13
  $region7: #{conv_attention_forward.2} parent=0 // loop_footer_branch
    %12 = sbr.rel target = $region3
  $region8: #{conv_attention_forward.2} parent=0 // loop_exit
    _

// kernel: conv_attention_forward.3
$region0: #{conv_attention_forward.3}
  #allocation0 [shape = 'u32[]', space=smem, size = 0x4, offset = 0x4, fixed_abs, tag = 'smem constant byte address 0x4 - core index']
  #allocation1 [shape = 'u32[72,128]{1,0:T(1,128)}', space=vmem, size = 0x9000, scoped, tag = 'internal scratch']
  %s0 = inlined_call_operand.vmem [shape: bf16[2,256,128], index: 0, kind: input, shape index: {}]
  %s1 = inlined_call_operand.vmem [shape: bf16[2,128,128], index: 1, kind: input, shape index: {}]
  %s2 = inlined_call_operand.vmem [shape: f32[2,1,128], index: 2, kind: input, shape index: {}]
  %s3 = inlined_call_operand.vmem [shape: bf16[128,128], index: 3, kind: input, shape index: {}]
  %s4 = inlined_call_operand.vmem [shape: f32[1,128], index: 4, kind: input, shape index: {}]
  %s5 = inlined_call_operand.vmem [shape: bf16[128,128], index: 5, kind: input, shape index: {}]
  %s6 = inlined_call_operand.vmem [shape: f32[1,128], index: 6, kind: input, shape index: {}]
  %s7 = inlined_call_operand.vmem [shape: bf16[128,128], index: 7, kind: input, shape index: {}]
  %s8 = inlined_call_operand.vmem [shape: f32[1,128], index: 8, kind: input, shape index: {}]
  %s9 = inlined_call_operand.vmem [shape: f32[2,1,256,128], index: 9, kind: output, shape index: {0}]
  %s10 = inlined_call_operand.vmem [shape: f32[2,1,256,128], index: 10, kind: output, shape index: {1}]
  %11 = xla_tuple %s9, %s10
  %s12 = sld [smem:[#allocation0]]
  $region77: #{conv_attention_forward.3} parent=0
    _
  %s14 = ssub.s32 1, %s12
  %s15 = scalar_select 0, %s14, %s12
  loop: start=0, step=1, limit=4
  $region2: #{conv_attention_forward.3} parent=0 // loop_pre_header
    _
  $region3: #{conv_attention_forward.3} parent=0 // loop_header
    %s17 = sphi 0, %s21
    %p18 = scmp.ge.s32.totalorder %s17, 4
    %s24 = sphi 0, %s36
    %s25 = sphi 0, %s32
    %s26 = sphi 0, %s24
    %s27 = sphi 0, %s25
    %s28 = sphi 0, %s26
    %s29 = sphi 0, %s27
    %s41 = sphi 0, %s43
    %s44 = sphi 0, %s41
    %s45 = sphi 0, %s44
    %s61 = sphi 0, %s45
    %s67 = sphi 0, %s69
    %s70 = sphi 0, %s67
    %s71 = sphi 0, %s70
    %s87 = sphi 0, %s71
    %s93 = sphi 0, %s95
    %s96 = sphi 0, %s93
    %s97 = sphi 0, %s96
    %s113 = sphi 0, %s97
    %s117 = sphi 0, %s117
    %s119 = sphi 0, %s117
    %s120 = sphi 0, %s119
    %s134 = sphi 0, %s120
    %s138 = sphi 0, %s138
    %s140 = sphi 0, %s138
    %s141 = sphi 0, %s140
    %s155 = sphi 0, %s141
    %s159 = sphi 0, %s159
    %s161 = sphi 0, %s159
    %s162 = sphi 0, %s161
    %s176 = sphi 0, %s162
    %s180 = sphi 0, %s180
    %s182 = sphi 0, %s180
    %s183 = sphi 0, %s182
    %s197 = sphi 0, %s183
    %s201 = sphi 0, %s201
    %s203 = sphi 0, %s201
    %s204 = sphi 0, %s203
    %s218 = sphi 0, %s204
    %s222 = sphi 0, %s222
    %s224 = sphi 0, %s222
    %s225 = sphi 0, %s224
    %s239 = sphi 0, %s225
    %s247 = sphi 0, %s249
    %s250 = sphi 0, %s247
    %s251 = sphi 0, %s250
    %s267 = sphi 0, %s251
    %s275 = sphi 0, %s277
    %s278 = sphi 0, %s275
    %s279 = sphi 0, %s278
    %s295 = sphi 0, %s279
  $region4: #{conv_attention_forward.3} parent=0 // loop_header_branch
    %20 = sbr.rel (%p18) target = $region8
  $region5: #{conv_attention_forward.3} parent=0 // loop_body
    %s22 = ssub.s32 %s17, 1
    %s23 = ssub.s32 %s17, 2
    %s30 = sadd.s32 1, %s25
    %p31 = scmp.ge.s32.totalorder %s30, 1
    %s32 = scalar_select %p31, 0, %s30
    %s33 = sadd.s32 1, %s24
    %s34 = scalar_select %p31, %s33, %s24
    %p35 = scmp.ge.s32.totalorder %s34, 2
    %s36 = scalar_select %p35, 0, %s34
    %s37 = ssub.s32 %s24, %s36
    %s38 = ssub.s32 %s25, %s32
    %s39 = sor.u32 %s37, %s38
    %p40 = scmp.eq.s32.totalorder %s39, 0
    %s42 = sadd.s32 %s41, 1
    %s43 = scalar_select %p40, %s41, %s42
    %p46 = pneg %p40
    %p47 = scmp.eq.s32.totalorder %s17, 1
    %p48 = por %p46, %p47
    %p49 = scmp.ne.s32.totalorder %s41, %s44
    %p50 = scmp.eq.s32.totalorder %s17, 0
    %p51 = por %p49, %p50
    %p52 = scmp.ne.s32.totalorder %s41, %s44
    %p53 = scmp.eq.s32.totalorder %s22, 1
    %p54 = por %p52, %p53
    %p55 = scmp.ne.s32.totalorder %s44, %s45
    %p56 = scmp.eq.s32.totalorder %s22, 0
    %p57 = por %p55, %p56
    %p58 = scmp.ne.s32.totalorder %s44, %s45
    %p59 = scmp.eq.s32.totalorder %s23, 1
    %p60 = por %p58, %p59
    %p62 = scmp.ne.s32.totalorder %s45, %s61
    %p63 = scmp.eq.s32.totalorder %s23, 0
    %p64 = por %p62, %p63
    %s65 = ssub.s32 %s24, %s36
    %p66 = scmp.eq.s32.totalorder %s65, 0
    %s68 = sadd.s32 %s67, 1
    %s69 = scalar_select %p66, %s67, %s68
    %p72 = pneg %p66
    %p73 = scmp.eq.s32.totalorder %s17, 1
    %p74 = por %p72, %p73
    %p75 = scmp.ne.s32.totalorder %s67, %s70
    %p76 = scmp.eq.s32.totalorder %s17, 0
    %p77 = por %p75, %p76
    %p78 = scmp.ne.s32.totalorder %s67, %s70
    %p79 = scmp.eq.s32.totalorder %s22, 1
    %p80 = por %p78, %p79
    %p81 = scmp.ne.s32.totalorder %s70, %s71
    %p82 = scmp.eq.s32.totalorder %s22, 0
    %p83 = por %p81, %p82
    %p84 = scmp.ne.s32.totalorder %s70, %s71
    %p85 = scmp.eq.s32.totalorder %s23, 1
    %p86 = por %p84, %p85
    %p88 = scmp.ne.s32.totalorder %s71, %s87
    %p89 = scmp.eq.s32.totalorder %s23, 0
    %p90 = por %p88, %p89
    %s91 = ssub.s32 %s24, %s36
    %p92 = scmp.eq.s32.totalorder %s91, 0
    %s94 = sadd.s32 %s93, 1
    %s95 = scalar_select %p92, %s93, %s94
    %p98 = pneg %p92
    %p99 = scmp.eq.s32.totalorder %s17, 1
    %p100 = por %p98, %p99
    %p101 = scmp.ne.s32.totalorder %s93, %s96
    %p102 = scmp.eq.s32.totalorder %s17, 0
    %p103 = por %p101, %p102
    %p104 = scmp.ne.s32.totalorder %s93, %s96
    %p105 = scmp.eq.s32.totalorder %s22, 1
    %p106 = por %p104, %p105
    %p107 = scmp.ne.s32.totalorder %s96, %s97
    %p108 = scmp.eq.s32.totalorder %s22, 0
    %p109 = por %p107, %p108
    %p110 = scmp.ne.s32.totalorder %s96, %s97
    %p111 = scmp.eq.s32.totalorder %s23, 1
    %p112 = por %p110, %p111
    %p114 = scmp.ne.s32.totalorder %s97, %s113
    %p115 = scmp.eq.s32.totalorder %s23, 0
    %p116 = por %p114, %p115
    %s118 = sadd.s32 %s117, 1
    %p121 = scmp.eq.s32.totalorder %s17, 1
    %p122 = scmp.ne.s32.totalorder %s117, %s119
    %p123 = scmp.eq.s32.totalorder %s17, 0
    %p124 = por %p122, %p123
    %p125 = scmp.ne.s32.totalorder %s117, %s119
    %p126 = scmp.eq.s32.totalorder %s22, 1
    %p127 = por %p125, %p126
    %p128 = scmp.ne.s32.totalorder %s119, %s120
    %p129 = scmp.eq.s32.totalorder %s22, 0
    %p130 = por %p128, %p129
    %p131 = scmp.ne.s32.totalorder %s119, %s120
    %p132 = scmp.eq.s32.totalorder %s23, 1
    %p133 = por %p131, %p132
    %p135 = scmp.ne.s32.totalorder %s120, %s134
    %p136 = scmp.eq.s32.totalorder %s23, 0
    %p137 = por %p135, %p136
    %s139 = sadd.s32 %s138, 1
    %p142 = scmp.eq.s32.totalorder %s17, 1
    %p143 = scmp.ne.s32.totalorder %s138, %s140
    %p144 = scmp.eq.s32.totalorder %s17, 0
    %p145 = por %p143, %p144
    %p146 = scmp.ne.s32.totalorder %s138, %s140
    %p147 = scmp.eq.s32.totalorder %s22, 1
    %p148 = por %p146, %p147
    %p149 = scmp.ne.s32.totalorder %s140, %s141
    %p150 = scmp.eq.s32.totalorder %s22, 0
    %p151 = por %p149, %p150
    %p152 = scmp.ne.s32.totalorder %s140, %s141
    %p153 = scmp.eq.s32.totalorder %s23, 1
    %p154 = por %p152, %p153
    %p156 = scmp.ne.s32.totalorder %s141, %s155
    %p157 = scmp.eq.s32.totalorder %s23, 0
    %p158 = por %p156, %p157
    %s160 = sadd.s32 %s159, 1
    %p163 = scmp.eq.s32.totalorder %s17, 1
    %p164 = scmp.ne.s32.totalorder %s159, %s161
    %p165 = scmp.eq.s32.totalorder %s17, 0
    %p166 = por %p164, %p165
    %p167 = scmp.ne.s32.totalorder %s159, %s161
    %p168 = scmp.eq.s32.totalorder %s22, 1
    %p169 = por %p167, %p168
    %p170 = scmp.ne.s32.totalorder %s161, %s162
    %p171 = scmp.eq.s32.totalorder %s22, 0
    %p172 = por %p170, %p171
    %p173 = scmp.ne.s32.totalorder %s161, %s162
    %p174 = scmp.eq.s32.totalorder %s23, 1
    %p175 = por %p173, %p174
    %p177 = scmp.ne.s32.totalorder %s162, %s176
    %p178 = scmp.eq.s32.totalorder %s23, 0
    %p179 = por %p177, %p178
    %s181 = sadd.s32 %s180, 1
    %p184 = scmp.eq.s32.totalorder %s17, 1
    %p185 = scmp.ne.s32.totalorder %s180, %s182
    %p186 = scmp.eq.s32.totalorder %s17, 0
    %p187 = por %p185, %p186
    %p188 = scmp.ne.s32.totalorder %s180, %s182
    %p189 = scmp.eq.s32.totalorder %s22, 1
    %p190 = por %p188, %p189
    %p191 = scmp.ne.s32.totalorder %s182, %s183
    %p192 = scmp.eq.s32.totalorder %s22, 0
    %p193 = por %p191, %p192
    %p194 = scmp.ne.s32.totalorder %s182, %s183
    %p195 = scmp.eq.s32.totalorder %s23, 1
    %p196 = por %p194, %p195
    %p198 = scmp.ne.s32.totalorder %s183, %s197
    %p199 = scmp.eq.s32.totalorder %s23, 0
    %p200 = por %p198, %p199
    %s202 = sadd.s32 %s201, 1
    %p205 = scmp.eq.s32.totalorder %s17, 1
    %p206 = scmp.ne.s32.totalorder %s201, %s203
    %p207 = scmp.eq.s32.totalorder %s17, 0
    %p208 = por %p206, %p207
    %p209 = scmp.ne.s32.totalorder %s201, %s203
    %p210 = scmp.eq.s32.totalorder %s22, 1
    %p211 = por %p209, %p210
    %p212 = scmp.ne.s32.totalorder %s203, %s204
    %p213 = scmp.eq.s32.totalorder %s22, 0
    %p214 = por %p212, %p213
    %p215 = scmp.ne.s32.totalorder %s203, %s204
    %p216 = scmp.eq.s32.totalorder %s23, 1
    %p217 = por %p215, %p216
    %p219 = scmp.ne.s32.totalorder %s204, %s218
    %p220 = scmp.eq.s32.totalorder %s23, 0
    %p221 = por %p219, %p220
    %s223 = sadd.s32 %s222, 1
    %p226 = scmp.eq.s32.totalorder %s17, 1
    %p227 = scmp.ne.s32.totalorder %s222, %s224
    %p228 = scmp.eq.s32.totalorder %s17, 0
    %p229 = por %p227, %p228
    %p230 = scmp.ne.s32.totalorder %s222, %s224
    %p231 = scmp.eq.s32.totalorder %s22, 1
    %p232 = por %p230, %p231
    %p233 = scmp.ne.s32.totalorder %s224, %s225
    %p234 = scmp.eq.s32.totalorder %s22, 0
    %p235 = por %p233, %p234
    %p236 = scmp.ne.s32.totalorder %s224, %s225
    %p237 = scmp.eq.s32.totalorder %s23, 1
    %p238 = por %p236, %p237
    %p240 = scmp.ne.s32.totalorder %s225, %s239
    %p241 = scmp.eq.s32.totalorder %s23, 0
    %p242 = por %p240, %p241
    %s243 = ssub.s32 %s24, %s36
    %s244 = ssub.s32 %s25, %s32
    %s245 = sor.u32 %s243, %s244
    %p246 = scmp.eq.s32.totalorder %s245, 0
    %s248 = sadd.s32 %s247, 1
    %s249 = scalar_select %p246, %s247, %s248
    %p252 = pneg %p246
    %p253 = scmp.eq.s32.totalorder %s17, 1
    %p254 = por %p252, %p253
    %p255 = scmp.ne.s32.totalorder %s247, %s250
    %p256 = scmp.eq.s32.totalorder %s17, 0
    %p257 = por %p255, %p256
    %p258 = scmp.ne.s32.totalorder %s247, %s250
    %p259 = scmp.eq.s32.totalorder %s22, 1
    %p260 = por %p258, %p259
    %p261 = scmp.ne.s32.totalorder %s250, %s251
    %p262 = scmp.eq.s32.totalorder %s22, 0
    %p263 = por %p261, %p262
    %p264 = scmp.ne.s32.totalorder %s250, %s251
    %p265 = scmp.eq.s32.totalorder %s23, 1
    %p266 = por %p264, %p265
    %p268 = scmp.ne.s32.totalorder %s251, %s267
    %p269 = scmp.eq.s32.totalorder %s23, 0
    %p270 = por %p268, %p269
    %s271 = ssub.s32 %s24, %s36
    %s272 = ssub.s32 %s25, %s32
    %s273 = sor.u32 %s271, %s272
    %p274 = scmp.eq.s32.totalorder %s273, 0
    %s276 = sadd.s32 %s275, 1
    %s277 = scalar_select %p274, %s275, %s276
    %p280 = pneg %p274
    %p281 = scmp.eq.s32.totalorder %s17, 1
    %p282 = por %p280, %p281
    %p283 = scmp.ne.s32.totalorder %s275, %s278
    %p284 = scmp.eq.s32.totalorder %s17, 0
    %p285 = por %p283, %p284
    %p286 = scmp.ne.s32.totalorder %s275, %s278
    %p287 = scmp.eq.s32.totalorder %s22, 1
    %p288 = por %p286, %p287
    %p289 = scmp.ne.s32.totalorder %s278, %s279
    %p290 = scmp.eq.s32.totalorder %s22, 0
    %p291 = por %p289, %p290
    %p292 = scmp.ne.s32.totalorder %s278, %s279
    %p293 = scmp.eq.s32.totalorder %s23, 1
    %p294 = por %p292, %p293
    %p296 = scmp.ne.s32.totalorder %s279, %s295
    %p297 = scmp.eq.s32.totalorder %s23, 0
    %p298 = por %p296, %p297
    %p299 = scmp.le.s32.totalorder 1, %s17
    %p300 = scmp.lt.s32.totalorder %s17, 3
    %p301 = pnand %p299, %p300
    %p302 = pneg %p301
    // Predicated region
    $region9: #{conv_attention_forward.3} parent=5 // pred_check
      _
    $region10: #{conv_attention_forward.3} parent=5 // pred_check_branch
      %304 = sbr.rel (%p301) target = $region12
    $region11: #{conv_attention_forward.3} parent=5 // pred_region
      %s305 = ssub.s32 %s17, 1
      // Predicated region
      $region13: #{conv_attention_forward.3} parent=11 // pred_check
        %p306 = pneg %p130
      $region14: #{conv_attention_forward.3} parent=11 // pred_check_branch
        %308 = sbr.rel (%p306) target = $region16
      $region15: #{conv_attention_forward.3} parent=11 // pred_region
        _
      $region16: #{conv_attention_forward.3} parent=11 // pred_fallthru
        _
      // Predicated region
      $region17: #{conv_attention_forward.3} parent=11 // pred_check
        %p309 = pneg %p151
      $region18: #{conv_attention_forward.3} parent=11 // pred_check_branch
        %311 = sbr.rel (%p309) target = $region20
      $region19: #{conv_attention_forward.3} parent=11 // pred_region
        _
      $region20: #{conv_attention_forward.3} parent=11 // pred_fallthru
        _
      // Predicated region
      $region21: #{conv_attention_forward.3} parent=11 // pred_check
        %p312 = pneg %p172
      $region22: #{conv_attention_forward.3} parent=11 // pred_check_branch
        %314 = sbr.rel (%p312) target = $region24
      $region23: #{conv_attention_forward.3} parent=11 // pred_region
        _
      $region24: #{conv_attention_forward.3} parent=11 // pred_fallthru
        _
      // Predicated region
      $region25: #{conv_attention_forward.3} parent=11 // pred_check
        %p315 = pneg %p193
      $region26: #{conv_attention_forward.3} parent=11 // pred_check_branch
        %317 = sbr.rel (%p315) target = $region28
      $region27: #{conv_attention_forward.3} parent=11 // pred_region
        _
      $region28: #{conv_attention_forward.3} parent=11 // pred_fallthru
        _
      // Predicated region
      $region29: #{conv_attention_forward.3} parent=11 // pred_check
        %p318 = pneg %p214
      $region30: #{conv_attention_forward.3} parent=11 // pred_check_branch
        %320 = sbr.rel (%p318) target = $region32
      $region31: #{conv_attention_forward.3} parent=11 // pred_region
        _
      $region32: #{conv_attention_forward.3} parent=11 // pred_fallthru
        _
      // Predicated region
      $region33: #{conv_attention_forward.3} parent=11 // pred_check
        %p321 = pneg %p235
      $region34: #{conv_attention_forward.3} parent=11 // pred_check_branch
        %323 = sbr.rel (%p321) target = $region36
      $region35: #{conv_attention_forward.3} parent=11 // pred_region
        _
      $region36: #{conv_attention_forward.3} parent=11 // pred_fallthru
        _
    $region12: #{conv_attention_forward.3} parent=5 // pred_fallthru
      _
    %p324 = scmp.lt.s32.totalorder %s17, 2
    // Predicated region
    $region37: #{conv_attention_forward.3} parent=5 // pred_check
      %p325 = pneg %p324
    $region38: #{conv_attention_forward.3} parent=5 // pred_check_branch
      %327 = sbr.rel (%p325) target = $region40
    $region39: #{conv_attention_forward.3} parent=5 // pred_region
      // Predicated region
      $region41: #{conv_attention_forward.3} parent=39 // pred_check
        %p328 = pneg %p51
      $region42: #{conv_attention_forward.3} parent=39 // pred_check_branch
        %330 = sbr.rel (%p328) target = $region44
      $region43: #{conv_attention_forward.3} parent=39 // pred_region
        %s331 = smul.u32 32, %s25
        %p332 = scmp.lt.s32.totalorder %s24, 1
        %s333 = scalar_select %p332, %s24, 1
        %p334 = scmp.lt.s32.totalorder %s331, 31
        %s335 = scalar_select %p334, %s331, 31
        %s336 = smul.addr %s333, 32
        %s337 = sadd.s32 %s335, %s336
        %s338 = smul.addr %s337, 4
        %s339 = scalar_lea.vmem %s0, %s338
        %s340 = smul.u32 32, %s25
      $region44: #{conv_attention_forward.3} parent=39 // pred_fallthru
        _
      // Predicated region
      $region45: #{conv_attention_forward.3} parent=39 // pred_check
        %p341 = pneg %p77
      $region46: #{conv_attention_forward.3} parent=39 // pred_check_branch
        %343 = sbr.rel (%p341) target = $region48
      $region47: #{conv_attention_forward.3} parent=39 // pred_region
        %p344 = scmp.lt.s32.totalorder %s24, 1
        %s345 = scalar_select %p344, %s24, 1
        %s346 = smul.addr %s345, 16
        %s347 = smul.addr %s346, 4
        %s348 = scalar_lea.vmem %s1, %s347
      $region48: #{conv_attention_forward.3} parent=39 // pred_fallthru
        _
      // Predicated region
      $region49: #{conv_attention_forward.3} parent=39 // pred_check
        %p349 = pneg %p103
      $region50: #{conv_attention_forward.3} parent=39 // pred_check_branch
        %351 = sbr.rel (%p349) target = $region52
      $region51: #{conv_attention_forward.3} parent=39 // pred_region
        %p352 = scmp.lt.s32.totalorder %s24, 1
        %s353 = scalar_select %p352, %s24, 1
        %s354 = scalar_lea.vmem %s2, %s353
      $region52: #{conv_attention_forward.3} parent=39 // pred_fallthru
        _
    $region40: #{conv_attention_forward.3} parent=5 // pred_fallthru
      _
    %p355 = scmp.le.s32.totalorder 1, %s17
    %p356 = scmp.lt.s32.totalorder %s17, 3
    %p357 = pnand %p355, %p356
    %p358 = pneg %p357
    // Predicated region
    $region53: #{conv_attention_forward.3} parent=5 // pred_check
      _
    $region54: #{conv_attention_forward.3} parent=5 // pred_check_branch
      %360 = sbr.rel (%p357) target = $region56
    $region55: #{conv_attention_forward.3} parent=5 // pred_region
      %s361 = ssub.s32 %s17, 1
      %s362 = smul.u32 32, %s27
      %p363 = scmp.lt.s32.totalorder %s26, 1
      %s364 = scalar_select %p363, %s26, 1
      %p365 = scmp.lt.s32.totalorder %s362, 31
      %s366 = scalar_select %p365, %s362, 31
      %s367 = smul.addr %s364, 32
      %s368 = sadd.s32 %s366, %s367
      %s369 = smul.addr %s368, 4
      %s370 = scalar_lea.vmem %s0, %s369
      %p371 = pneg %p57
      %p372 = pneg %p54
      %p373 = scmp.lt.s32.totalorder %s26, 1
      %s374 = scalar_select %p373, %s26, 1
      %s375 = smul.addr %s374, 16
      %s376 = smul.addr %s375, 4
      %s377 = scalar_lea.vmem %s1, %s376
      %p378 = pneg %p83
      %p379 = pneg %p80
      %p380 = scmp.lt.s32.totalorder %s26, 1
      %s381 = scalar_select %p380, %s26, 1
      %s382 = scalar_lea.vmem %s2, %s381
      %p383 = pneg %p109
      %p384 = pneg %p106
      %p385 = pneg %p130
      %p386 = pneg %p127
      %p387 = pneg %p151
      %p388 = pneg %p148
      %p389 = pneg %p172
      %p390 = pneg %p169
      %p391 = pneg %p193
      %p392 = pneg %p190
      %p393 = pneg %p214
      %p394 = pneg %p211
      %p395 = pneg %p235
      %p396 = pneg %p232
      %p397 = pneg %p263
      %p398 = pneg %p260
      %s399 = smul.u32 32, %s27
      %p400 = scmp.lt.s32.totalorder %s26, 1
      %s401 = scalar_select %p400, %s26, 1
      %p402 = scmp.lt.s32.totalorder %s399, 31
      %s403 = scalar_select %p402, %s399, 31
      %s404 = smul.addr %s401, 32
      %s405 = sadd.s32 %s403, %s404
      %s406 = smul.addr %s405, 8
      %s407 = scalar_lea.vmem %s9, %s406
      %p408 = pneg %p291
      %p409 = pneg %p288
      %s410 = smul.u32 32, %s27
      %p411 = scmp.lt.s32.totalorder %s26, 1
      %s412 = scalar_select %p411, %s26, 1
      %p413 = scmp.lt.s32.totalorder %s410, 31
      %s414 = scalar_select %p413, %s410, 31
      %s415 = smul.addr %s412, 32
      %s416 = sadd.s32 %s414, %s415
      %s417 = smul.addr %s416, 8
      %s418 = scalar_lea.vmem %s10, %s417
      %s419 = smul.u32 32, %s27
      %p420 = scmp.lt.s32.totalorder %s26, 1
      %s421 = scalar_select %p420, %s26, 1
      %p422 = scmp.lt.s32.totalorder %s419, 31
      %s423 = scalar_select %p422, %s419, 31
      %s424 = smul.addr %s421, 32
      %s425 = sadd.s32 %s423, %s424
      %s426 = smul.addr %s425, 4
      %s427 = scalar_lea.vmem %s0, %s426
      %s428 = smul.u32 32, %s27
      %p429 = scmp.lt.s32.totalorder %s26, 1
      %s430 = scalar_select %p429, %s26, 1
      %s431 = smul.addr %s430, 16
      %s432 = smul.addr %s431, 4
      %s433 = scalar_lea.vmem %s1, %s432
      %p434 = scmp.lt.s32.totalorder %s26, 1
      %s435 = scalar_select %p434, %s26, 1
      %s436 = scalar_lea.vmem %s2, %s435
      %s437 = smul.u32 32, %s27
      %p438 = scmp.lt.s32.totalorder %s26, 1
      %s439 = scalar_select %p438, %s26, 1
      %p440 = scmp.lt.s32.totalorder %s437, 31
      %s441 = scalar_select %p440, %s437, 31
      %s442 = smul.addr %s439, 32
      %s443 = sadd.s32 %s441, %s442
      %s444 = smul.addr %s443, 8
      %s445 = scalar_lea.vmem %s9, %s444
      %s446 = smul.u32 32, %s27
      %s447 = smul.u32 32, %s27
      %p448 = scmp.lt.s32.totalorder %s26, 1
      %s449 = scalar_select %p448, %s26, 1
      %p450 = scmp.lt.s32.totalorder %s447, 31
      %s451 = scalar_select %p450, %s447, 31
      %s452 = smul.addr %s449, 32
      %s453 = sadd.s32 %s451, %s452
      %s454 = smul.addr %s453, 8
      %s455 = scalar_lea.vmem %s10, %s454
      %s456 = smul.u32 32, %s27
      %v457 = vld [vmem:[%s427] sm:$0xf]
      %v458 = vld [vmem:[%s427 + $0x4] sm:$0xf]
      %v459 = vld [vmem:[%s427 + $0x8] sm:$0xf]
      %v460 = vld [vmem:[%s427 + $0xc] sm:$0xf]
      %v461 = vld [vmem:[%s427 + $0x10] sm:$0xf]
      %v462 = vld [vmem:[%s427 + $0x14] sm:$0xf]
      %v463 = vld [vmem:[%s427 + $0x18] sm:$0xf]
      %v464 = vld [vmem:[%s427 + $0x1c] sm:$0xf]
      %v465 = vld [vmem:[%s427 + $0x20] sm:$0xf]
      %v466 = vld [vmem:[%s427 + $0x24] sm:$0xf]
      %v467 = vld [vmem:[%s427 + $0x28] sm:$0xf]
      %v468 = vld [vmem:[%s427 + $0x2c] sm:$0xf]
      %v469 = vld [vmem:[%s427 + $0x30] sm:$0xf]
      %v470 = vld [vmem:[%s427 + $0x34] sm:$0xf]
      %v471 = vld [vmem:[%s427 + $0x38] sm:$0xf]
      %v472 = vld [vmem:[%s427 + $0x3c] sm:$0xf]
      %v473 = vld [vmem:[%s427 + $0x40] sm:$0xf]
      %v474 = vld [vmem:[%s427 + $0x44] sm:$0xf]
      %v475 = vld [vmem:[%s427 + $0x48] sm:$0xf]
      %v476 = vld [vmem:[%s427 + $0x4c] sm:$0xf]
      %v477 = vld [vmem:[%s427 + $0x50] sm:$0xf]
      %v478 = vld [vmem:[%s427 + $0x54] sm:$0xf]
      %v479 = vld [vmem:[%s427 + $0x58] sm:$0xf]
      %v480 = vld [vmem:[%s427 + $0x5c] sm:$0xf]
      %v481 = vld [vmem:[%s427 + $0x60] sm:$0xf]
      %v482 = vld [vmem:[%s427 + $0x64] sm:$0xf]
      %v483 = vld [vmem:[%s427 + $0x68] sm:$0xf]
      %v484 = vld [vmem:[%s427 + $0x6c] sm:$0xf]
      %v485 = vld [vmem:[%s427 + $0x70] sm:$0xf]
      %v486 = vld [vmem:[%s427 + $0x74] sm:$0xf]
      %v487 = vld [vmem:[%s427 + $0x78] sm:$0xf]
      %v488 = vld [vmem:[%s427 + $0x7c] sm:$0xf]
      %v489 = vld [vmem:[%s3] sm:$0xf]
      %v490 = vld [vmem:[%s3 + $0x4] sm:$0xf]
      %v491 = vld [vmem:[%s3 + $0x8] sm:$0xf]
      %v492 = vld [vmem:[%s3 + $0xc] sm:$0xf]
      %v493 = vld [vmem:[%s3 + $0x10] sm:$0xf]
      %v494 = vld [vmem:[%s3 + $0x14] sm:$0xf]
      %v495 = vld [vmem:[%s3 + $0x18] sm:$0xf]
      %v496 = vld [vmem:[%s3 + $0x1c] sm:$0xf]
      %v497 = vld [vmem:[%s3 + $0x20] sm:$0xf]
      %v498 = vld [vmem:[%s3 + $0x24] sm:$0xf]
      %v499 = vld [vmem:[%s3 + $0x28] sm:$0xf]
      %v500 = vld [vmem:[%s3 + $0x2c] sm:$0xf]
      %v501 = vld [vmem:[%s3 + $0x30] sm:$0xf]
      %v502 = vld [vmem:[%s3 + $0x34] sm:$0xf]
      %v503 = vld [vmem:[%s3 + $0x38] sm:$0xf]
      %v504 = vld [vmem:[%s3 + $0x3c] sm:$0xf]
      %v505 = vld [vmem:[%s4] sm:$0x1]
      %v507 = vperm.slane %v505, 0
      %v541 = vunpack.c.l.b16 %v457
      %v542 = vunpack.c.l.b16 %v458
      %v543 = vunpack.c.l.b16 %v459
      %v544 = vunpack.c.l.b16 %v460
      %v545 = vunpack.c.l.b16 %v461
      %v546 = vunpack.c.l.b16 %v462
      %v547 = vunpack.c.l.b16 %v463
      %v548 = vunpack.c.l.b16 %v464
      %v549 = vunpack.c.l.b16 %v465
      %v550 = vunpack.c.l.b16 %v466
      %v551 = vunpack.c.l.b16 %v467
      %v552 = vunpack.c.l.b16 %v468
      %v553 = vunpack.c.l.b16 %v469
      %v554 = vunpack.c.l.b16 %v470
      %v555 = vunpack.c.l.b16 %v471
      %v556 = vunpack.c.l.b16 %v472
      %v557 = vunpack.c.l.b16 %v473
      %v558 = vunpack.c.l.b16 %v474
      %v559 = vunpack.c.l.b16 %v475
      %v560 = vunpack.c.l.b16 %v476
      %v561 = vunpack.c.l.b16 %v477
      %v562 = vunpack.c.l.b16 %v478
      %v563 = vunpack.c.l.b16 %v479
      %v564 = vunpack.c.l.b16 %v480
      %v565 = vunpack.c.l.b16 %v481
      %v566 = vunpack.c.l.b16 %v482
      %v567 = vunpack.c.l.b16 %v483
      %v568 = vunpack.c.l.b16 %v484
      %v569 = vunpack.c.l.b16 %v485
      %v570 = vunpack.c.l.b16 %v486
      %v571 = vunpack.c.l.b16 %v487
      %v572 = vunpack.c.l.b16 %v488
      %v573 = vpack.c.b16 %v542, %v541
      %v574 = vpack.c.b16 %v544, %v543
      %v575 = vpack.c.b16 %v546, %v545
      %v576 = vpack.c.b16 %v548, %v547
      %v577 = vpack.c.b16 %v550, %v549
      %v578 = vpack.c.b16 %v552, %v551
      %v579 = vpack.c.b16 %v554, %v553
      %v580 = vpack.c.b16 %v556, %v555
      %v581 = vpack.c.b16 %v558, %v557
      %v582 = vpack.c.b16 %v560, %v559
      %v583 = vpack.c.b16 %v562, %v561
      %v584 = vpack.c.b16 %v564, %v563
      %v585 = vpack.c.b16 %v566, %v565
      %v586 = vpack.c.b16 %v568, %v567
      %v587 = vpack.c.b16 %v570, %v569
      %v588 = vpack.c.b16 %v572, %v571
      %v621 = vunpack.c.l.b16 %v489
      %v622 = vunpack.c.l.b16 %v490
      %v623 = vunpack.c.l.b16 %v491
      %v624 = vunpack.c.l.b16 %v492
      %v625 = vunpack.c.l.b16 %v493
      %v626 = vunpack.c.l.b16 %v494
      %v627 = vunpack.c.l.b16 %v495
      %v628 = vunpack.c.l.b16 %v496
      %v629 = vunpack.c.l.b16 %v497
      %v630 = vunpack.c.l.b16 %v498
      %v631 = vunpack.c.l.b16 %v499
      %v632 = vunpack.c.l.b16 %v500
      %v633 = vunpack.c.l.b16 %v501
      %v634 = vunpack.c.l.b16 %v502
      %v635 = vunpack.c.l.b16 %v503
      %v636 = vunpack.c.l.b16 %v504
      %v637 = vpack.c.b16 %v622, %v621
      %v638 = vpack.c.b16 %v624, %v623
      %v639 = vpack.c.b16 %v626, %v625
      %v640 = vpack.c.b16 %v628, %v627
      %v641 = vpack.c.b16 %v630, %v629
      %v642 = vpack.c.b16 %v632, %v631
      %v643 = vpack.c.b16 %v634, %v633
      %v644 = vpack.c.b16 %v636, %v635
      %653 = vmatpush.bf16.msra.mxu0 %v644
      %654 = vmatpush.bf16.msra.mxu0 %v643
      %655 = vmatpush.bf16.msra.mxu0 %v642
      %656 = vmatpush.bf16.msra.mxu0 %v641
      %657 = vmatpush.bf16.msra.mxu0 %v640
      %658 = vmatpush.bf16.msra.mxu0 %v639
      %659 = vmatpush.bf16.msra.mxu0 %v638
      %660 = vmatpush.bf16.msra.mxu0 %v637
      %661 = vmatmul.bf16.gmra.mxu0 %v573
      %v662 = vpop.f32.mrf.mxu0
      %v663 = vadd.f32 %v507, %v662
      %v664 = vpop.f32.mrf.mxu0
      %v665 = vadd.f32 %v507, %v664
      %666 = vmatmul.bf16.gmra.mxu0 %v574
      %v667 = vpop.f32.mrf.mxu0
      %v668 = vadd.f32 %v507, %v667
      %v669 = vpop.f32.mrf.mxu0
      %v670 = vadd.f32 %v507, %v669
      %671 = vmatmul.bf16.gmra.mxu0 %v575
      %v672 = vpop.f32.mrf.mxu0
      %v673 = vadd.f32 %v507, %v672
      %v674 = vpop.f32.mrf.mxu0
      %v675 = vadd.f32 %v507, %v674
      %676 = vmatmul.bf16.gmra.mxu0 %v576
      %v677 = vpop.f32.mrf.mxu0
      %v678 = vadd.f32 %v507, %v677
      %v679 = vpop.f32.mrf.mxu0
      %v680 = vadd.f32 %v507, %v679
      %681 = vmatmul.bf16.gmra.mxu0 %v577
      %v682 = vpop.f32.mrf.mxu0
      %v683 = vadd.f32 %v507, %v682
      %v684 = vpop.f32.mrf.mxu0
      %v685 = vadd.f32 %v507, %v684
      %686 = vmatmul.bf16.gmra.mxu0 %v578
      %v687 = vpop.f32.mrf.mxu0
      %v688 = vadd.f32 %v507, %v687
      %v689 = vpop.f32.mrf.mxu0
      %v690 = vadd.f32 %v507, %v689
      %691 = vmatmul.bf16.gmra.mxu0 %v579
      %v692 = vpop.f32.mrf.mxu0
      %v693 = vadd.f32 %v507, %v692
      %v694 = vpop.f32.mrf.mxu0
      %v695 = vadd.f32 %v507, %v694
      %696 = vmatmul.bf16.gmra.mxu0 %v580
      %v697 = vpop.f32.mrf.mxu0
      %v698 = vadd.f32 %v507, %v697
      %v699 = vpop.f32.mrf.mxu0
      %v700 = vadd.f32 %v507, %v699
      %701 = vmatmul.bf16.gmra.mxu0 %v581
      %v702 = vpop.f32.mrf.mxu0
      %v703 = vadd.f32 %v507, %v702
      %v704 = vpop.f32.mrf.mxu0
      %v705 = vadd.f32 %v507, %v704
      %706 = vmatmul.bf16.gmra.mxu0 %v582
      %v707 = vpop.f32.mrf.mxu0
      %v708 = vadd.f32 %v507, %v707
      %v709 = vpop.f32.mrf.mxu0
      %v710 = vadd.f32 %v507, %v709
      %711 = vmatmul.bf16.gmra.mxu0 %v583
      %v712 = vpop.f32.mrf.mxu0
      %v713 = vadd.f32 %v507, %v712
      %v714 = vpop.f32.mrf.mxu0
      %v715 = vadd.f32 %v507, %v714
      %716 = vmatmul.bf16.gmra.mxu0 %v584
      %v717 = vpop.f32.mrf.mxu0
      %v718 = vadd.f32 %v507, %v717
      %v719 = vpop.f32.mrf.mxu0
      %v720 = vadd.f32 %v507, %v719
      %721 = vmatmul.bf16.gmra.mxu0 %v585
      %v722 = vpop.f32.mrf.mxu0
      %v723 = vadd.f32 %v507, %v722
      %v724 = vpop.f32.mrf.mxu0
      %v725 = vadd.f32 %v507, %v724
      %726 = vmatmul.bf16.gmra.mxu0 %v586
      %v727 = vpop.f32.mrf.mxu0
      %v728 = vadd.f32 %v507, %v727
      %v729 = vpop.f32.mrf.mxu0
      %v730 = vadd.f32 %v507, %v729
      %731 = vmatmul.bf16.gmra.mxu0 %v587
      %v732 = vpop.f32.mrf.mxu0
      %v733 = vadd.f32 %v507, %v732
      %v734 = vpop.f32.mrf.mxu0
      %v735 = vadd.f32 %v507, %v734
      %736 = vmatmul.bf16.gmra.mxu0 %v588
      %v737 = vpop.f32.mrf.mxu0
      %v738 = vadd.f32 %v507, %v737
      %v739 = vpop.f32.mrf.mxu0
      %v740 = vadd.f32 %v507, %v739
      %741 = vdwg.mxu0
      %v742 = vmax.f32 %v663, 0.0
      %v743 = vmax.f32 %v665, 0.0
      %v744 = vmax.f32 %v668, 0.0
      %v745 = vmax.f32 %v670, 0.0
      %v746 = vmax.f32 %v673, 0.0
      %v747 = vmax.f32 %v675, 0.0
      %v748 = vmax.f32 %v678, 0.0
      %v749 = vmax.f32 %v680, 0.0
      %v750 = vmax.f32 %v683, 0.0
      %v751 = vmax.f32 %v685, 0.0
      %v752 = vmax.f32 %v688, 0.0
      %v753 = vmax.f32 %v690, 0.0
      %v754 = vmax.f32 %v693, 0.0
      %v755 = vmax.f32 %v695, 0.0
      %v756 = vmax.f32 %v698, 0.0
      %v757 = vmax.f32 %v700, 0.0
      %v758 = vmax.f32 %v703, 0.0
      %v759 = vmax.f32 %v705, 0.0
      %v760 = vmax.f32 %v708, 0.0
      %v761 = vmax.f32 %v710, 0.0
      %v762 = vmax.f32 %v713, 0.0
      %v763 = vmax.f32 %v715, 0.0
      %v764 = vmax.f32 %v718, 0.0
      %v765 = vmax.f32 %v720, 0.0
      %v766 = vmax.f32 %v723, 0.0
      %v767 = vmax.f32 %v725, 0.0
      %v768 = vmax.f32 %v728, 0.0
      %v769 = vmax.f32 %v730, 0.0
      %v770 = vmax.f32 %v733, 0.0
      %v771 = vmax.f32 %v735, 0.0
      %v772 = vmax.f32 %v738, 0.0
      %v773 = vmax.f32 %v740, 0.0
      %v774 = vpack.c.bf16 %v743, %v742
      %v775 = vpack.c.bf16 %v745, %v744
      %v776 = vpack.c.bf16 %v747, %v746
      %v777 = vpack.c.bf16 %v749, %v748
      %v778 = vpack.c.bf16 %v751, %v750
      %v779 = vpack.c.bf16 %v753, %v752
      %v780 = vpack.c.bf16 %v755, %v754
      %v781 = vpack.c.bf16 %v757, %v756
      %v782 = vpack.c.bf16 %v759, %v758
      %v783 = vpack.c.bf16 %v761, %v760
      %v784 = vpack.c.bf16 %v763, %v762
      %v785 = vpack.c.bf16 %v765, %v764
      %v786 = vpack.c.bf16 %v767, %v766
      %v787 = vpack.c.bf16 %v769, %v768
      %v788 = vpack.c.bf16 %v771, %v770
      %v789 = vpack.c.bf16 %v773, %v772
      %v790 = vld [vmem:[%s5] sm:$0xf]
      %v791 = vld [vmem:[%s5 + $0x4] sm:$0xf]
      %v792 = vld [vmem:[%s5 + $0x8] sm:$0xf]
      %v793 = vld [vmem:[%s5 + $0xc] sm:$0xf]
      %v794 = vld [vmem:[%s5 + $0x10] sm:$0xf]
      %v795 = vld [vmem:[%s5 + $0x14] sm:$0xf]
      %v796 = vld [vmem:[%s5 + $0x18] sm:$0xf]
      %v797 = vld [vmem:[%s5 + $0x1c] sm:$0xf]
      %v798 = vld [vmem:[%s5 + $0x20] sm:$0xf]
      %v799 = vld [vmem:[%s5 + $0x24] sm:$0xf]
      %v800 = vld [vmem:[%s5 + $0x28] sm:$0xf]
      %v801 = vld [vmem:[%s5 + $0x2c] sm:$0xf]
      %v802 = vld [vmem:[%s5 + $0x30] sm:$0xf]
      %v803 = vld [vmem:[%s5 + $0x34] sm:$0xf]
      %v804 = vld [vmem:[%s5 + $0x38] sm:$0xf]
      %v805 = vld [vmem:[%s5 + $0x3c] sm:$0xf]
      %v806 = vld [vmem:[%s6] sm:$0x1]
      %v808 = vperm.slane %v806, 0
      %v826 = vunpack.c.l.b16 %v790
      %v827 = vunpack.c.l.b16 %v791
      %v828 = vunpack.c.l.b16 %v792
      %v829 = vunpack.c.l.b16 %v793
      %v830 = vunpack.c.l.b16 %v794
      %v831 = vunpack.c.l.b16 %v795
      %v832 = vunpack.c.l.b16 %v796
      %v833 = vunpack.c.l.b16 %v797
      %v834 = vunpack.c.l.b16 %v798
      %v835 = vunpack.c.l.b16 %v799
      %v836 = vunpack.c.l.b16 %v800
      %v837 = vunpack.c.l.b16 %v801
      %v838 = vunpack.c.l.b16 %v802
      %v839 = vunpack.c.l.b16 %v803
      %v840 = vunpack.c.l.b16 %v804
      %v841 = vunpack.c.l.b16 %v805
      %v842 = vpack.c.b16 %v827, %v826
      %v843 = vpack.c.b16 %v829, %v828
      %v844 = vpack.c.b16 %v831, %v830
      %v845 = vpack.c.b16 %v833, %v832
      %v846 = vpack.c.b16 %v835, %v834
      %v847 = vpack.c.b16 %v837, %v836
      %v848 = vpack.c.b16 %v839, %v838
      %v849 = vpack.c.b16 %v841, %v840
      %858 = vmatpush.bf16.msra.mxu0 %v849
      %859 = vmatpush.bf16.msra.mxu0 %v848
      %860 = vmatpush.bf16.msra.mxu0 %v847
      %861 = vmatpush.bf16.msra.mxu0 %v846
      %862 = vmatpush.bf16.msra.mxu0 %v845
      %863 = vmatpush.bf16.msra.mxu0 %v844
      %864 = vmatpush.bf16.msra.mxu0 %v843
      %865 = vmatpush.bf16.msra.mxu0 %v842
      %866 = vmatmul.bf16.gmra.mxu0 %v774
      %v867 = vpop.f32.mrf.mxu0
      %v868 = vadd.f32 %v808, %v867
      %v869 = vpop.f32.mrf.mxu0
      %v870 = vadd.f32 %v808, %v869
      %871 = vmatmul.bf16.gmra.mxu0 %v775
      %v872 = vpop.f32.mrf.mxu0
      %v873 = vadd.f32 %v808, %v872
      %v874 = vpop.f32.mrf.mxu0
      %v875 = vadd.f32 %v808, %v874
      %876 = vmatmul.bf16.gmra.mxu0 %v776
      %v877 = vpop.f32.mrf.mxu0
      %v878 = vadd.f32 %v808, %v877
      %v879 = vpop.f32.mrf.mxu0
      %v880 = vadd.f32 %v808, %v879
      %881 = vmatmul.bf16.gmra.mxu0 %v777
      %v882 = vpop.f32.mrf.mxu0
      %v883 = vadd.f32 %v808, %v882
      %v884 = vpop.f32.mrf.mxu0
      %v885 = vadd.f32 %v808, %v884
      %886 = vmatmul.bf16.gmra.mxu0 %v778
      %v887 = vpop.f32.mrf.mxu0
      %v888 = vadd.f32 %v808, %v887
      %v889 = vpop.f32.mrf.mxu0
      %v890 = vadd.f32 %v808, %v889
      %891 = vmatmul.bf16.gmra.mxu0 %v779
      %v892 = vpop.f32.mrf.mxu0
      %v893 = vadd.f32 %v808, %v892
      %v894 = vpop.f32.mrf.mxu0
      %v895 = vadd.f32 %v808, %v894
      %896 = vmatmul.bf16.gmra.mxu0 %v780
      %v897 = vpop.f32.mrf.mxu0
      %v898 = vadd.f32 %v808, %v897
      %v899 = vpop.f32.mrf.mxu0
      %v900 = vadd.f32 %v808, %v899
      %901 = vmatmul.bf16.gmra.mxu0 %v781
      %v902 = vpop.f32.mrf.mxu0
      %v903 = vadd.f32 %v808, %v902
      %v904 = vpop.f32.mrf.mxu0
      %v905 = vadd.f32 %v808, %v904
      %906 = vmatmul.bf16.gmra.mxu0 %v782
      %v907 = vpop.f32.mrf.mxu0
      %v908 = vadd.f32 %v808, %v907
      %v909 = vpop.f32.mrf.mxu0
      %v910 = vadd.f32 %v808, %v909
      %911 = vmatmul.bf16.gmra.mxu0 %v783
      %v912 = vpop.f32.mrf.mxu0
      %v913 = vadd.f32 %v808, %v912
      %v914 = vpop.f32.mrf.mxu0
      %v915 = vadd.f32 %v808, %v914
      %916 = vmatmul.bf16.gmra.mxu0 %v784
      %v917 = vpop.f32.mrf.mxu0
      %v918 = vadd.f32 %v808, %v917
      %v919 = vpop.f32.mrf.mxu0
      %v920 = vadd.f32 %v808, %v919
      %921 = vmatmul.bf16.gmra.mxu0 %v785
      %v922 = vpop.f32.mrf.mxu0
      %v923 = vadd.f32 %v808, %v922
      %v924 = vpop.f32.mrf.mxu0
      %v925 = vadd.f32 %v808, %v924
      %926 = vmatmul.bf16.gmra.mxu0 %v786
      %v927 = vpop.f32.mrf.mxu0
      %v928 = vadd.f32 %v808, %v927
      %v929 = vpop.f32.mrf.mxu0
      %v930 = vadd.f32 %v808, %v929
      %931 = vmatmul.bf16.gmra.mxu0 %v787
      %v932 = vpop.f32.mrf.mxu0
      %v933 = vadd.f32 %v808, %v932
      %v934 = vpop.f32.mrf.mxu0
      %v935 = vadd.f32 %v808, %v934
      %936 = vmatmul.bf16.gmra.mxu0 %v788
      %v937 = vpop.f32.mrf.mxu0
      %v938 = vadd.f32 %v808, %v937
      %v939 = vpop.f32.mrf.mxu0
      %v940 = vadd.f32 %v808, %v939
      %941 = vmatmul.bf16.gmra.mxu0 %v789
      %v942 = vpop.f32.mrf.mxu0
      %v943 = vadd.f32 %v808, %v942
      %v944 = vpop.f32.mrf.mxu0
      %v945 = vadd.f32 %v808, %v944
      %946 = vdwg.mxu0
      %v947 = vmax.f32 %v868, 0.0
      %v948 = vmax.f32 %v870, 0.0
      %v949 = vmax.f32 %v873, 0.0
      %v950 = vmax.f32 %v875, 0.0
      %v951 = vmax.f32 %v878, 0.0
      %v952 = vmax.f32 %v880, 0.0
      %v953 = vmax.f32 %v883, 0.0
      %v954 = vmax.f32 %v885, 0.0
      %v955 = vmax.f32 %v888, 0.0
      %v956 = vmax.f32 %v890, 0.0
      %v957 = vmax.f32 %v893, 0.0
      %v958 = vmax.f32 %v895, 0.0
      %v959 = vmax.f32 %v898, 0.0
      %v960 = vmax.f32 %v900, 0.0
      %v961 = vmax.f32 %v903, 0.0
      %v962 = vmax.f32 %v905, 0.0
      %v963 = vmax.f32 %v908, 0.0
      %v964 = vmax.f32 %v910, 0.0
      %v965 = vmax.f32 %v913, 0.0
      %v966 = vmax.f32 %v915, 0.0
      %v967 = vmax.f32 %v918, 0.0
      %v968 = vmax.f32 %v920, 0.0
      %v969 = vmax.f32 %v923, 0.0
      %v970 = vmax.f32 %v925, 0.0
      %v971 = vmax.f32 %v928, 0.0
      %v972 = vmax.f32 %v930, 0.0
      %v973 = vmax.f32 %v933, 0.0
      %v974 = vmax.f32 %v935, 0.0
      %v975 = vmax.f32 %v938, 0.0
      %v976 = vmax.f32 %v940, 0.0
      %v977 = vmax.f32 %v943, 0.0
      %v978 = vmax.f32 %v945, 0.0
      %v979 = vpack.c.bf16 %v948, %v947
      %v980 = vpack.c.bf16 %v950, %v949
      %v981 = vpack.c.bf16 %v952, %v951
      %v982 = vpack.c.bf16 %v954, %v953
      %v983 = vpack.c.bf16 %v956, %v955
      %v984 = vpack.c.bf16 %v958, %v957
      %v985 = vpack.c.bf16 %v960, %v959
      %v986 = vpack.c.bf16 %v962, %v961
      %v987 = vpack.c.bf16 %v964, %v963
      %v988 = vpack.c.bf16 %v966, %v965
      %v989 = vpack.c.bf16 %v968, %v967
      %v990 = vpack.c.bf16 %v970, %v969
      %v991 = vpack.c.bf16 %v972, %v971
      %v992 = vpack.c.bf16 %v974, %v973
      %v993 = vpack.c.bf16 %v976, %v975
      %v994 = vpack.c.bf16 %v978, %v977
      %v995 = vld [vmem:[%s7] sm:$0xf]
      %v996 = vld [vmem:[%s7 + $0x4] sm:$0xf]
      %v997 = vld [vmem:[%s7 + $0x8] sm:$0xf]
      %v998 = vld [vmem:[%s7 + $0xc] sm:$0xf]
      %v999 = vld [vmem:[%s7 + $0x10] sm:$0xf]
      %v1000 = vld [vmem:[%s7 + $0x14] sm:$0xf]
      %v1001 = vld [vmem:[%s7 + $0x18] sm:$0xf]
      %v1002 = vld [vmem:[%s7 + $0x1c] sm:$0xf]
      %v1003 = vld [vmem:[%s7 + $0x20] sm:$0xf]
      %v1004 = vld [vmem:[%s7 + $0x24] sm:$0xf]
      %v1005 = vld [vmem:[%s7 + $0x28] sm:$0xf]
      %v1006 = vld [vmem:[%s7 + $0x2c] sm:$0xf]
      %v1007 = vld [vmem:[%s7 + $0x30] sm:$0xf]
      %v1008 = vld [vmem:[%s7 + $0x34] sm:$0xf]
      %v1009 = vld [vmem:[%s7 + $0x38] sm:$0xf]
      %v1010 = vld [vmem:[%s7 + $0x3c] sm:$0xf]
      %v1011 = vld [vmem:[%s8] sm:$0x1]
      %v1013 = vperm.slane %v1011, 0
      %v1031 = vunpack.c.l.b16 %v995
      %v1032 = vunpack.c.l.b16 %v996
      %v1033 = vunpack.c.l.b16 %v997
      %v1034 = vunpack.c.l.b16 %v998
      %v1035 = vunpack.c.l.b16 %v999
      %v1036 = vunpack.c.l.b16 %v1000
      %v1037 = vunpack.c.l.b16 %v1001
      %v1038 = vunpack.c.l.b16 %v1002
      %v1039 = vunpack.c.l.b16 %v1003
      %v1040 = vunpack.c.l.b16 %v1004
      %v1041 = vunpack.c.l.b16 %v1005
      %v1042 = vunpack.c.l.b16 %v1006
      %v1043 = vunpack.c.l.b16 %v1007
      %v1044 = vunpack.c.l.b16 %v1008
      %v1045 = vunpack.c.l.b16 %v1009
      %v1046 = vunpack.c.l.b16 %v1010
      %v1047 = vpack.c.b16 %v1032, %v1031
      %v1048 = vpack.c.b16 %v1034, %v1033
      %v1049 = vpack.c.b16 %v1036, %v1035
      %v1050 = vpack.c.b16 %v1038, %v1037
      %v1051 = vpack.c.b16 %v1040, %v1039
      %v1052 = vpack.c.b16 %v1042, %v1041
      %v1053 = vpack.c.b16 %v1044, %v1043
      %v1054 = vpack.c.b16 %v1046, %v1045
      %1063 = vmatpush.bf16.msra.mxu0 %v1054
      %1064 = vmatpush.bf16.msra.mxu0 %v1053
      %1065 = vmatpush.bf16.msra.mxu0 %v1052
      %1066 = vmatpush.bf16.msra.mxu0 %v1051
      %1067 = vmatpush.bf16.msra.mxu0 %v1050
      %1068 = vmatpush.bf16.msra.mxu0 %v1049
      %1069 = vmatpush.bf16.msra.mxu0 %v1048
      %1070 = vmatpush.bf16.msra.mxu0 %v1047
      %1071 = vmatmul.bf16.gmra.mxu0 %v979
      %v1072 = vpop.f32.mrf.mxu0
      %v1073 = vadd.f32 %v1013, %v1072
      %v1074 = vpop.f32.mrf.mxu0
      %v1075 = vadd.f32 %v1013, %v1074
      %1076 = vmatmul.bf16.gmra.mxu0 %v980
      %v1077 = vpop.f32.mrf.mxu0
      %v1078 = vadd.f32 %v1013, %v1077
      %v1079 = vpop.f32.mrf.mxu0
      %v1080 = vadd.f32 %v1013, %v1079
      %1081 = vmatmul.bf16.gmra.mxu0 %v981
      %v1082 = vpop.f32.mrf.mxu0
      %v1083 = vadd.f32 %v1013, %v1082
      %v1084 = vpop.f32.mrf.mxu0
      %v1085 = vadd.f32 %v1013, %v1084
      %1086 = vmatmul.bf16.gmra.mxu0 %v982
      %v1087 = vpop.f32.mrf.mxu0
      %v1088 = vadd.f32 %v1013, %v1087
      %v1089 = vpop.f32.mrf.mxu0
      %v1090 = vadd.f32 %v1013, %v1089
      %1091 = vmatmul.bf16.gmra.mxu0 %v983
      %v1092 = vpop.f32.mrf.mxu0
      %v1093 = vadd.f32 %v1013, %v1092
      %v1094 = vpop.f32.mrf.mxu0
      %v1095 = vadd.f32 %v1013, %v1094
      %1096 = vmatmul.bf16.gmra.mxu0 %v984
      %v1097 = vpop.f32.mrf.mxu0
      %v1098 = vadd.f32 %v1013, %v1097
      %v1099 = vpop.f32.mrf.mxu0
      %v1100 = vadd.f32 %v1013, %v1099
      %1101 = vmatmul.bf16.gmra.mxu0 %v985
      %v1102 = vpop.f32.mrf.mxu0
      %v1103 = vadd.f32 %v1013, %v1102
      %v1104 = vpop.f32.mrf.mxu0
      %v1105 = vadd.f32 %v1013, %v1104
      %1106 = vmatmul.bf16.gmra.mxu0 %v986
      %v1107 = vpop.f32.mrf.mxu0
      %v1108 = vadd.f32 %v1013, %v1107
      %v1109 = vpop.f32.mrf.mxu0
      %v1110 = vadd.f32 %v1013, %v1109
      %1111 = vmatmul.bf16.gmra.mxu0 %v987
      %v1112 = vpop.f32.mrf.mxu0
      %v1113 = vadd.f32 %v1013, %v1112
      %v1114 = vpop.f32.mrf.mxu0
      %v1115 = vadd.f32 %v1013, %v1114
      %1116 = vmatmul.bf16.gmra.mxu0 %v988
      %v1117 = vpop.f32.mrf.mxu0
      %v1118 = vadd.f32 %v1013, %v1117
      %v1119 = vpop.f32.mrf.mxu0
      %v1120 = vadd.f32 %v1013, %v1119
      %1121 = vmatmul.bf16.gmra.mxu0 %v989
      %v1122 = vpop.f32.mrf.mxu0
      %v1123 = vadd.f32 %v1013, %v1122
      %v1124 = vpop.f32.mrf.mxu0
      %v1125 = vadd.f32 %v1013, %v1124
      %1126 = vmatmul.bf16.gmra.mxu0 %v990
      %v1127 = vpop.f32.mrf.mxu0
      %v1128 = vadd.f32 %v1013, %v1127
      %v1129 = vpop.f32.mrf.mxu0
      %v1130 = vadd.f32 %v1013, %v1129
      %1131 = vmatmul.bf16.gmra.mxu0 %v991
      %v1132 = vpop.f32.mrf.mxu0
      %v1133 = vadd.f32 %v1013, %v1132
      %v1134 = vpop.f32.mrf.mxu0
      %v1135 = vadd.f32 %v1013, %v1134
      %1136 = vmatmul.bf16.gmra.mxu0 %v992
      %v1137 = vpop.f32.mrf.mxu0
      %v1138 = vadd.f32 %v1013, %v1137
      %v1139 = vpop.f32.mrf.mxu0
      %v1140 = vadd.f32 %v1013, %v1139
      %1141 = vmatmul.bf16.gmra.mxu0 %v993
      %v1142 = vpop.f32.mrf.mxu0
      %v1143 = vadd.f32 %v1013, %v1142
      %v1144 = vpop.f32.mrf.mxu0
      %v1145 = vadd.f32 %v1013, %v1144
      %1146 = vmatmul.bf16.gmra.mxu0 %v994
      %v1147 = vpop.f32.mrf.mxu0
      %v1148 = vadd.f32 %v1013, %v1147
      %v1149 = vpop.f32.mrf.mxu0
      %v1150 = vadd.f32 %v1013, %v1149
      %1151 = vdwg.mxu0
      %v1152 = vmul.f32 %v1073, %v1073
      %v1153 = vmul.f32 %v1075, %v1075
      %v1154 = vmul.f32 %v1078, %v1078
      %v1155 = vmul.f32 %v1080, %v1080
      %v1156 = vmul.f32 %v1083, %v1083
      %v1157 = vmul.f32 %v1085, %v1085
      %v1158 = vmul.f32 %v1088, %v1088
      %v1159 = vmul.f32 %v1090, %v1090
      %v1160 = vmul.f32 %v1093, %v1093
      %v1161 = vmul.f32 %v1095, %v1095
      %v1162 = vmul.f32 %v1098, %v1098
      %v1163 = vmul.f32 %v1100, %v1100
      %v1164 = vmul.f32 %v1103, %v1103
      %v1165 = vmul.f32 %v1105, %v1105
      %v1166 = vmul.f32 %v1108, %v1108
      %v1167 = vmul.f32 %v1110, %v1110
      %v1168 = vmul.f32 %v1113, %v1113
      %v1169 = vmul.f32 %v1115, %v1115
      %v1170 = vmul.f32 %v1118, %v1118
      %v1171 = vmul.f32 %v1120, %v1120
      %v1172 = vmul.f32 %v1123, %v1123
      %v1173 = vmul.f32 %v1125, %v1125
      %v1174 = vmul.f32 %v1128, %v1128
      %v1175 = vmul.f32 %v1130, %v1130
      %v1176 = vmul.f32 %v1133, %v1133
      %v1177 = vmul.f32 %v1135, %v1135
      %v1178 = vmul.f32 %v1138, %v1138
      %v1179 = vmul.f32 %v1140, %v1140
      %v1180 = vmul.f32 %v1143, %v1143
      %v1181 = vmul.f32 %v1145, %v1145
      %v1182 = vmul.f32 %v1148, %v1148
      %v1183 = vmul.f32 %v1150, %v1150
      %1184 = vadd.xlane.f32.xlu0 %v1152
      %v1185 = vpop.xlane.xlu0 %1184
      %1186 = vadd.xlane.f32.xlu0 %v1153
      %v1187 = vpop.xlane.xlu0 %1186
      %1188 = vadd.xlane.f32.xlu0 %v1154
      %v1189 = vpop.xlane.xlu0 %1188
      %1190 = vadd.xlane.f32.xlu0 %v1155
      %v1191 = vpop.xlane.xlu0 %1190
      %1192 = vadd.xlane.f32.xlu0 %v1156
      %v1193 = vpop.xlane.xlu0 %1192
      %1194 = vadd.xlane.f32.xlu0 %v1157
      %v1195 = vpop.xlane.xlu0 %1194
      %1196 = vadd.xlane.f32.xlu0 %v1158
      %v1197 = vpop.xlane.xlu0 %1196
      %1198 = vadd.xlane.f32.xlu0 %v1159
      %v1199 = vpop.xlane.xlu0 %1198
      %1200 = vadd.xlane.f32.xlu0 %v1160
      %v1201 = vpop.xlane.xlu0 %1200
      %1202 = vadd.xlane.f32.xlu0 %v1161
      %v1203 = vpop.xlane.xlu0 %1202
      %1204 = vadd.xlane.f32.xlu0 %v1162
      %v1205 = vpop.xlane.xlu0 %1204
      %1206 = vadd.xlane.f32.xlu0 %v1163
      %v1207 = vpop.xlane.xlu0 %1206
      %1208 = vadd.xlane.f32.xlu0 %v1164
      %v1209 = vpop.xlane.xlu0 %1208
      %1210 = vadd.xlane.f32.xlu0 %v1165
      %v1211 = vpop.xlane.xlu0 %1210
      %1212 = vadd.xlane.f32.xlu0 %v1166
      %v1213 = vpop.xlane.xlu0 %1212
      %1214 = vadd.xlane.f32.xlu0 %v1167
      %v1215 = vpop.xlane.xlu0 %1214
      %1216 = vadd.xlane.f32.xlu0 %v1168
      %v1217 = vpop.xlane.xlu0 %1216
      %1218 = vadd.xlane.f32.xlu0 %v1169
      %v1219 = vpop.xlane.xlu0 %1218
      %1220 = vadd.xlane.f32.xlu0 %v1170
      %v1221 = vpop.xlane.xlu0 %1220
      %1222 = vadd.xlane.f32.xlu0 %v1171
      %v1223 = vpop.xlane.xlu0 %1222
      %1224 = vadd.xlane.f32.xlu0 %v1172
      %v1225 = vpop.xlane.xlu0 %1224
      %1226 = vadd.xlane.f32.xlu0 %v1173
      %v1227 = vpop.xlane.xlu0 %1226
      %1228 = vadd.xlane.f32.xlu0 %v1174
      %v1229 = vpop.xlane.xlu0 %1228
      %1230 = vadd.xlane.f32.xlu0 %v1175
      %v1231 = vpop.xlane.xlu0 %1230
      %1232 = vadd.xlane.f32.xlu0 %v1176
      %v1233 = vpop.xlane.xlu0 %1232
      %1234 = vadd.xlane.f32.xlu0 %v1177
      %v1235 = vpop.xlane.xlu0 %1234
      %1236 = vadd.xlane.f32.xlu0 %v1178
      %v1237 = vpop.xlane.xlu0 %1236
      %1238 = vadd.xlane.f32.xlu0 %v1179
      %v1239 = vpop.xlane.xlu0 %1238
      %1240 = vadd.xlane.f32.xlu0 %v1180
      %v1241 = vpop.xlane.xlu0 %1240
      %1242 = vadd.xlane.f32.xlu0 %v1181
      %v1243 = vpop.xlane.xlu0 %1242
      %1244 = vadd.xlane.f32.xlu0 %v1182
      %v1245 = vpop.xlane.xlu0 %1244
      %1246 = vadd.xlane.f32.xlu0 %v1183
      %v1247 = vpop.xlane.xlu0 %1246
      %v1248 = vpack.c.bf16 %v1075, %v1073
      %v1249 = vpack.c.bf16 %v1080, %v1078
      %v1250 = vpack.c.bf16 %v1085, %v1083
      %v1251 = vpack.c.bf16 %v1090, %v1088
      %v1252 = vpack.c.bf16 %v1095, %v1093
      %v1253 = vpack.c.bf16 %v1100, %v1098
      %v1254 = vpack.c.bf16 %v1105, %v1103
      %v1255 = vpack.c.bf16 %v1110, %v1108
      %v1256 = vpack.c.bf16 %v1115, %v1113
      %v1257 = vpack.c.bf16 %v1120, %v1118
      %v1258 = vpack.c.bf16 %v1125, %v1123
      %v1259 = vpack.c.bf16 %v1130, %v1128
      %v1260 = vpack.c.bf16 %v1135, %v1133
      %v1261 = vpack.c.bf16 %v1140, %v1138
      %v1262 = vpack.c.bf16 %v1145, %v1143
      %v1263 = vpack.c.bf16 %v1150, %v1148
      %v1264 = vld [vmem:[%s433] sm:$0xf]
      %v1265 = vld [vmem:[%s433 + $0x4] sm:$0xf]
      %v1266 = vld [vmem:[%s433 + $0x8] sm:$0xf]
      %v1267 = vld [vmem:[%s433 + $0xc] sm:$0xf]
      %v1268 = vld [vmem:[%s433 + $0x10] sm:$0xf]
      %v1269 = vld [vmem:[%s433 + $0x14] sm:$0xf]
      %v1270 = vld [vmem:[%s433 + $0x18] sm:$0xf]
      %v1271 = vld [vmem:[%s433 + $0x1c] sm:$0xf]
      %v1272 = vld [vmem:[%s433 + $0x20] sm:$0xf]
      %v1273 = vld [vmem:[%s433 + $0x24] sm:$0xf]
      %v1274 = vld [vmem:[%s433 + $0x28] sm:$0xf]
      %v1275 = vld [vmem:[%s433 + $0x2c] sm:$0xf]
      %v1276 = vld [vmem:[%s433 + $0x30] sm:$0xf]
      %v1277 = vld [vmem:[%s433 + $0x34] sm:$0xf]
      %v1278 = vld [vmem:[%s433 + $0x38] sm:$0xf]
      %v1279 = vld [vmem:[%s433 + $0x3c] sm:$0xf]
      %v1296 = vunpack.c.l.b16 %v1264
      %v1297 = vunpack.c.l.b16 %v1265
      %v1298 = vunpack.c.l.b16 %v1266
      %v1299 = vunpack.c.l.b16 %v1267
      %v1300 = vunpack.c.l.b16 %v1268
      %v1301 = vunpack.c.l.b16 %v1269
      %v1302 = vunpack.c.l.b16 %v1270
      %v1303 = vunpack.c.l.b16 %v1271
      %v1304 = vunpack.c.l.b16 %v1272
      %v1305 = vunpack.c.l.b16 %v1273
      %v1306 = vunpack.c.l.b16 %v1274
      %v1307 = vunpack.c.l.b16 %v1275
      %v1308 = vunpack.c.l.b16 %v1276
      %v1309 = vunpack.c.l.b16 %v1277
      %v1310 = vunpack.c.l.b16 %v1278
      %v1311 = vunpack.c.l.b16 %v1279
      %v1312 = vpack.c.b16 %v1297, %v1296
      %v1313 = vpack.c.b16 %v1299, %v1298
      %v1314 = vpack.c.b16 %v1301, %v1300
      %v1315 = vpack.c.b16 %v1303, %v1302
      %v1316 = vpack.c.b16 %v1305, %v1304
      %v1317 = vpack.c.b16 %v1307, %v1306
      %v1318 = vpack.c.b16 %v1309, %v1308
      %v1319 = vpack.c.b16 %v1311, %v1310
      %1328 = vmatpush.bf16.msra.mxu0 %v1319
      %1329 = vmatpush.bf16.msra.mxu0 %v1318
      %1330 = vmatpush.bf16.msra.mxu0 %v1317
      %1331 = vmatpush.bf16.msra.mxu0 %v1316
      %1332 = vmatpush.bf16.msra.mxu0 %v1315
      %1333 = vmatpush.bf16.msra.mxu0 %v1314
      %1334 = vmatpush.bf16.msra.mxu0 %v1313
      %1335 = vmatpush.bf16.msra.mxu0 %v1312
      %1336 = vmatmul.bf16.gmra.mxu0 %v1248
      %v1337 = vpop.f32.mrf.mxu0
      %v1338 = vadd.f32 0.0, %v1337
      %v1339 = vpop.f32.mrf.mxu0
      %v1340 = vadd.f32 0.0, %v1339
      %1341 = vmatmul.bf16.gmra.mxu0 %v1249
      %v1342 = vpop.f32.mrf.mxu0
      %v1343 = vadd.f32 0.0, %v1342
      %v1344 = vpop.f32.mrf.mxu0
      %v1345 = vadd.f32 0.0, %v1344
      %1346 = vmatmul.bf16.gmra.mxu0 %v1250
      %v1347 = vpop.f32.mrf.mxu0
      %v1348 = vadd.f32 0.0, %v1347
      %v1349 = vpop.f32.mrf.mxu0
      %v1350 = vadd.f32 0.0, %v1349
      %1351 = vmatmul.bf16.gmra.mxu0 %v1251
      %v1352 = vpop.f32.mrf.mxu0
      %v1353 = vadd.f32 0.0, %v1352
      %v1354 = vpop.f32.mrf.mxu0
      %v1355 = vadd.f32 0.0, %v1354
      %1356 = vmatmul.bf16.gmra.mxu0 %v1252
      %v1357 = vpop.f32.mrf.mxu0
      %v1358 = vadd.f32 0.0, %v1357
      %v1359 = vpop.f32.mrf.mxu0
      %v1360 = vadd.f32 0.0, %v1359
      %1361 = vmatmul.bf16.gmra.mxu0 %v1253
      %v1362 = vpop.f32.mrf.mxu0
      %v1363 = vadd.f32 0.0, %v1362
      %v1364 = vpop.f32.mrf.mxu0
      %v1365 = vadd.f32 0.0, %v1364
      %1366 = vmatmul.bf16.gmra.mxu0 %v1254
      %v1367 = vpop.f32.mrf.mxu0
      %v1368 = vadd.f32 0.0, %v1367
      %v1369 = vpop.f32.mrf.mxu0
      %v1370 = vadd.f32 0.0, %v1369
      %1371 = vmatmul.bf16.gmra.mxu0 %v1255
      %v1372 = vpop.f32.mrf.mxu0
      %v1373 = vadd.f32 0.0, %v1372
      %v1374 = vpop.f32.mrf.mxu0
      %v1375 = vadd.f32 0.0, %v1374
      %1376 = vmatmul.bf16.gmra.mxu0 %v1256
      %v1377 = vpop.f32.mrf.mxu0
      %v1378 = vadd.f32 0.0, %v1377
      %v1379 = vpop.f32.mrf.mxu0
      %v1380 = vadd.f32 0.0, %v1379
      %1381 = vmatmul.bf16.gmra.mxu0 %v1257
      %v1382 = vpop.f32.mrf.mxu0
      %v1383 = vadd.f32 0.0, %v1382
      %v1384 = vpop.f32.mrf.mxu0
      %v1385 = vadd.f32 0.0, %v1384
      %1386 = vmatmul.bf16.gmra.mxu0 %v1258
      %v1387 = vpop.f32.mrf.mxu0
      %v1388 = vadd.f32 0.0, %v1387
      %v1389 = vpop.f32.mrf.mxu0
      %v1390 = vadd.f32 0.0, %v1389
      %1391 = vmatmul.bf16.gmra.mxu0 %v1259
      %v1392 = vpop.f32.mrf.mxu0
      %v1393 = vadd.f32 0.0, %v1392
      %v1394 = vpop.f32.mrf.mxu0
      %v1395 = vadd.f32 0.0, %v1394
      %1396 = vmatmul.bf16.gmra.mxu0 %v1260
      %v1397 = vpop.f32.mrf.mxu0
      %v1398 = vadd.f32 0.0, %v1397
      %v1399 = vpop.f32.mrf.mxu0
      %v1400 = vadd.f32 0.0, %v1399
      %1401 = vmatmul.bf16.gmra.mxu0 %v1261
      %v1402 = vpop.f32.mrf.mxu0
      %v1403 = vadd.f32 0.0, %v1402
      %v1404 = vpop.f32.mrf.mxu0
      %v1405 = vadd.f32 0.0, %v1404
      %1406 = vmatmul.bf16.gmra.mxu0 %v1262
      %v1407 = vpop.f32.mrf.mxu0
      %v1408 = vadd.f32 0.0, %v1407
      %v1409 = vpop.f32.mrf.mxu0
      %v1410 = vadd.f32 0.0, %v1409
      %1411 = vmatmul.bf16.gmra.mxu0 %v1263
      %v1412 = vpop.f32.mrf.mxu0
      %v1413 = vadd.f32 0.0, %v1412
      %v1414 = vpop.f32.mrf.mxu0
      %v1415 = vadd.f32 0.0, %v1414
      %1416 = vdwg.mxu0
      %v1417 = vmul.f32 %v1338, 0.001
      %v1418 = vmul.f32 %v1340, 0.001
      %v1419 = vmul.f32 %v1343, 0.001
      %v1420 = vmul.f32 %v1345, 0.001
      %v1421 = vmul.f32 %v1348, 0.001
      %v1422 = vmul.f32 %v1350, 0.001
      %v1423 = vmul.f32 %v1353, 0.001
      %v1424 = vmul.f32 %v1355, 0.001
      %v1425 = vmul.f32 %v1358, 0.001
      %v1426 = vmul.f32 %v1360, 0.001
      %v1427 = vmul.f32 %v1363, 0.001
      %v1428 = vmul.f32 %v1365, 0.001
      %v1429 = vmul.f32 %v1368, 0.001
      %v1430 = vmul.f32 %v1370, 0.001
      %v1431 = vmul.f32 %v1373, 0.001
      %v1432 = vmul.f32 %v1375, 0.001
      %v1433 = vmul.f32 %v1378, 0.001
      %v1434 = vmul.f32 %v1380, 0.001
      %v1435 = vmul.f32 %v1383, 0.001
      %v1436 = vmul.f32 %v1385, 0.001
      %v1437 = vmul.f32 %v1388, 0.001
      %v1438 = vmul.f32 %v1390, 0.001
      %v1439 = vmul.f32 %v1393, 0.001
      %v1440 = vmul.f32 %v1395, 0.001
      %v1441 = vmul.f32 %v1398, 0.001
      %v1442 = vmul.f32 %v1400, 0.001
      %v1443 = vmul.f32 %v1403, 0.001
      %v1444 = vmul.f32 %v1405, 0.001
      %v1445 = vmul.f32 %v1408, 0.001
      %v1446 = vmul.f32 %v1410, 0.001
      %v1447 = vmul.f32 %v1413, 0.001
      %v1448 = vmul.f32 %v1415, 0.001
      %v1449 = vmul.f32 %v1185, 0.0005
      %v1450 = vmul.f32 %v1187, 0.0005
      %v1451 = vmul.f32 %v1189, 0.0005
      %v1452 = vmul.f32 %v1191, 0.0005
      %v1453 = vmul.f32 %v1193, 0.0005
      %v1454 = vmul.f32 %v1195, 0.0005
      %v1455 = vmul.f32 %v1197, 0.0005
      %v1456 = vmul.f32 %v1199, 0.0005
      %v1457 = vmul.f32 %v1201, 0.0005
      %v1458 = vmul.f32 %v1203, 0.0005
      %v1459 = vmul.f32 %v1205, 0.0005
      %v1460 = vmul.f32 %v1207, 0.0005
      %v1461 = vmul.f32 %v1209, 0.0005
      %v1462 = vmul.f32 %v1211, 0.0005
      %v1463 = vmul.f32 %v1213, 0.0005
      %v1464 = vmul.f32 %v1215, 0.0005
      %v1465 = vmul.f32 %v1217, 0.0005
      %v1466 = vmul.f32 %v1219, 0.0005
      %v1467 = vmul.f32 %v1221, 0.0005
      %v1468 = vmul.f32 %v1223, 0.0005
      %v1469 = vmul.f32 %v1225, 0.0005
      %v1470 = vmul.f32 %v1227, 0.0005
      %v1471 = vmul.f32 %v1229, 0.0005
      %v1472 = vmul.f32 %v1231, 0.0005
      %v1473 = vmul.f32 %v1233, 0.0005
      %v1474 = vmul.f32 %v1235, 0.0005
      %v1475 = vmul.f32 %v1237, 0.0005
      %v1476 = vmul.f32 %v1239, 0.0005
      %v1477 = vmul.f32 %v1241, 0.0005
      %v1478 = vmul.f32 %v1243, 0.0005
      %v1479 = vmul.f32 %v1245, 0.0005
      %v1480 = vmul.f32 %v1247, 0.0005
      %v1481 = vsub.f32 %v1417, %v1449
      %v1482 = vsub.f32 %v1418, %v1450
      %v1483 = vsub.f32 %v1419, %v1451
      %v1484 = vsub.f32 %v1420, %v1452
      %v1485 = vsub.f32 %v1421, %v1453
      %v1486 = vsub.f32 %v1422, %v1454
      %v1487 = vsub.f32 %v1423, %v1455
      %v1488 = vsub.f32 %v1424, %v1456
      %v1489 = vsub.f32 %v1425, %v1457
      %v1490 = vsub.f32 %v1426, %v1458
      %v1491 = vsub.f32 %v1427, %v1459
      %v1492 = vsub.f32 %v1428, %v1460
      %v1493 = vsub.f32 %v1429, %v1461
      %v1494 = vsub.f32 %v1430, %v1462
      %v1495 = vsub.f32 %v1431, %v1463
      %v1496 = vsub.f32 %v1432, %v1464
      %v1497 = vsub.f32 %v1433, %v1465
      %v1498 = vsub.f32 %v1434, %v1466
      %v1499 = vsub.f32 %v1435, %v1467
      %v1500 = vsub.f32 %v1436, %v1468
      %v1501 = vsub.f32 %v1437, %v1469
      %v1502 = vsub.f32 %v1438, %v1470
      %v1503 = vsub.f32 %v1439, %v1471
      %v1504 = vsub.f32 %v1440, %v1472
      %v1505 = vsub.f32 %v1441, %v1473
      %v1506 = vsub.f32 %v1442, %v1474
      %v1507 = vsub.f32 %v1443, %v1475
      %v1508 = vsub.f32 %v1444, %v1476
      %v1509 = vsub.f32 %v1445, %v1477
      %v1510 = vsub.f32 %v1446, %v1478
      %v1511 = vsub.f32 %v1447, %v1479
      %v1512 = vsub.f32 %v1448, %v1480
      %v1513 = vld [vmem:[%s436] sm:$0x1]
      %v1514 = vmul.f32 %v1513, 0.0005
      %v1516 = vperm.slane %v1514, 0
      %v1518 = vsub.f32 %v1481, %v1516
      %v1519 = vsub.f32 %v1482, %v1516
      %v1520 = vsub.f32 %v1483, %v1516
      %v1521 = vsub.f32 %v1484, %v1516
      %v1522 = vsub.f32 %v1485, %v1516
      %v1523 = vsub.f32 %v1486, %v1516
      %v1524 = vsub.f32 %v1487, %v1516
      %v1525 = vsub.f32 %v1488, %v1516
      %v1526 = vsub.f32 %v1489, %v1516
      %v1527 = vsub.f32 %v1490, %v1516
      %v1528 = vsub.f32 %v1491, %v1516
      %v1529 = vsub.f32 %v1492, %v1516
      %v1530 = vsub.f32 %v1493, %v1516
      %v1531 = vsub.f32 %v1494, %v1516
      %v1532 = vsub.f32 %v1495, %v1516
      %v1533 = vsub.f32 %v1496, %v1516
      %v1534 = vsub.f32 %v1497, %v1516
      %v1535 = vsub.f32 %v1498, %v1516
      %v1536 = vsub.f32 %v1499, %v1516
      %v1537 = vsub.f32 %v1500, %v1516
      %v1538 = vsub.f32 %v1501, %v1516
      %v1539 = vsub.f32 %v1502, %v1516
      %v1540 = vsub.f32 %v1503, %v1516
      %v1541 = vsub.f32 %v1504, %v1516
      %v1542 = vsub.f32 %v1505, %v1516
      %v1543 = vsub.f32 %v1506, %v1516
      %v1544 = vsub.f32 %v1507, %v1516
      %v1545 = vsub.f32 %v1508, %v1516
      %v1546 = vsub.f32 %v1509, %v1516
      %v1547 = vsub.f32 %v1510, %v1516
      %v1548 = vsub.f32 %v1511, %v1516
      %v1549 = vsub.f32 %v1512, %v1516
      %1550 = vst [vmem:[%s455] sm:$0xff] %v1518
      %1551 = vst [vmem:[%s455 + $0x8] sm:$0xff] %v1519
      %1552 = vst [vmem:[%s455 + $0x10] sm:$0xff] %v1520
      %1553 = vst [vmem:[%s455 + $0x18] sm:$0xff] %v1521
      %1554 = vst [vmem:[%s455 + $0x20] sm:$0xff] %v1522
      %1555 = vst [vmem:[%s455 + $0x28] sm:$0xff] %v1523
      %1556 = vst [vmem:[%s455 + $0x30] sm:$0xff] %v1524
      %1557 = vst [vmem:[%s455 + $0x38] sm:$0xff] %v1525
      %1558 = vst [vmem:[%s455 + $0x40] sm:$0xff] %v1526
      %1559 = vst [vmem:[%s455 + $0x48] sm:$0xff] %v1527
      %1560 = vst [vmem:[%s455 + $0x50] sm:$0xff] %v1528
      %1561 = vst [vmem:[%s455 + $0x58] sm:$0xff] %v1529
      %1562 = vst [vmem:[%s455 + $0x60] sm:$0xff] %v1530
      %1563 = vst [vmem:[%s455 + $0x68] sm:$0xff] %v1531
      %1564 = vst [vmem:[%s455 + $0x70] sm:$0xff] %v1532
      %1565 = vst [vmem:[%s455 + $0x78] sm:$0xff] %v1533
      %1566 = vst [vmem:[%s455 + $0x80] sm:$0xff] %v1534
      %1567 = vst [vmem:[%s455 + $0x88] sm:$0xff] %v1535
      %1568 = vst [vmem:[%s455 + $0x90] sm:$0xff] %v1536
      %1569 = vst [vmem:[%s455 + $0x98] sm:$0xff] %v1537
      %1570 = vst [vmem:[%s455 + $0xa0] sm:$0xff] %v1538
      %1571 = vst [vmem:[%s455 + $0xa8] sm:$0xff] %v1539
      %1572 = vst [vmem:[%s455 + $0xb0] sm:$0xff] %v1540
      %1573 = vst [vmem:[%s455 + $0xb8] sm:$0xff] %v1541
      %1574 = vst [vmem:[%s455 + $0xc0] sm:$0xff] %v1542
      %1575 = vst [vmem:[%s455 + $0xc8] sm:$0xff] %v1543
      %1576 = vst [vmem:[%s455 + $0xd0] sm:$0xff] %v1544
      %1577 = vst [vmem:[%s455 + $0xd8] sm:$0xff] %v1545
      %1578 = vst [vmem:[%s455 + $0xe0] sm:$0xff] %v1546
      %1579 = vst [vmem:[%s455 + $0xe8] sm:$0xff] %v1547
      %1580 = vst [vmem:[%s455 + $0xf0] sm:$0xff] %v1548
      %1581 = vst [vmem:[%s455 + $0xf8] sm:$0xff] %v1549
      %v1582 = vlaneseq
      %v1583 = vand.u32 %v1582, 127
      %vm1584 = vcmp.lt.s32.totalorder %v1583, 40
      %v1585 = vsel %vm1584, %v1518, -1e+30
      %v1586 = vsel %vm1584, %v1519, -1e+30
      %v1587 = vsel %vm1584, %v1520, -1e+30
      %v1588 = vsel %vm1584, %v1521, -1e+30
      %v1589 = vsel %vm1584, %v1522, -1e+30
      %v1590 = vsel %vm1584, %v1523, -1e+30
      %v1591 = vsel %vm1584, %v1524, -1e+30
      %v1592 = vsel %vm1584, %v1525, -1e+30
      %v1593 = vsel %vm1584, %v1526, -1e+30
      %v1594 = vsel %vm1584, %v1527, -1e+30
      %v1595 = vsel %vm1584, %v1528, -1e+30
      %v1596 = vsel %vm1584, %v1529, -1e+30
      %v1597 = vsel %vm1584, %v1530, -1e+30
      %v1598 = vsel %vm1584, %v1531, -1e+30
      %v1599 = vsel %vm1584, %v1532, -1e+30
      %v1600 = vsel %vm1584, %v1533, -1e+30
      %v1601 = vsel %vm1584, %v1534, -1e+30
      %v1602 = vsel %vm1584, %v1535, -1e+30
      %v1603 = vsel %vm1584, %v1536, -1e+30
      %v1604 = vsel %vm1584, %v1537, -1e+30
      %v1605 = vsel %vm1584, %v1538, -1e+30
      %v1606 = vsel %vm1584, %v1539, -1e+30
      %v1607 = vsel %vm1584, %v1540, -1e+30
      %v1608 = vsel %vm1584, %v1541, -1e+30
      %v1609 = vsel %vm1584, %v1542, -1e+30
      %v1610 = vsel %vm1584, %v1543, -1e+30
      %v1611 = vsel %vm1584, %v1544, -1e+30
      %v1612 = vsel %vm1584, %v1545, -1e+30
      %v1613 = vsel %vm1584, %v1546, -1e+30
      %v1614 = vsel %vm1584, %v1547, -1e+30
      %v1615 = vsel %vm1584, %v1548, -1e+30
      %v1616 = vsel %vm1584, %v1549, -1e+30
      %1617 = vmax.xlane.f32.xlu0 %v1585
      %v1618 = vpop.xlane.xlu0 %1617
      %1619 = vmax.xlane.f32.xlu0 %v1586
      %v1620 = vpop.xlane.xlu0 %1619
      %1621 = vmax.xlane.f32.xlu0 %v1587
      %v1622 = vpop.xlane.xlu0 %1621
      %1623 = vmax.xlane.f32.xlu0 %v1588
      %v1624 = vpop.xlane.xlu0 %1623
      %1625 = vmax.xlane.f32.xlu0 %v1589
      %v1626 = vpop.xlane.xlu0 %1625
      %1627 = vmax.xlane.f32.xlu0 %v1590
      %v1628 = vpop.xlane.xlu0 %1627
      %1629 = vmax.xlane.f32.xlu0 %v1591
      %v1630 = vpop.xlane.xlu0 %1629
      %1631 = vmax.xlane.f32.xlu0 %v1592
      %v1632 = vpop.xlane.xlu0 %1631
      %1633 = vmax.xlane.f32.xlu0 %v1593
      %v1634 = vpop.xlane.xlu0 %1633
      %1635 = vmax.xlane.f32.xlu0 %v1594
      %v1636 = vpop.xlane.xlu0 %1635
      %1637 = vmax.xlane.f32.xlu0 %v1595
      %v1638 = vpop.xlane.xlu0 %1637
      %1639 = vmax.xlane.f32.xlu0 %v1596
      %v1640 = vpop.xlane.xlu0 %1639
      %1641 = vmax.xlane.f32.xlu0 %v1597
      %v1642 = vpop.xlane.xlu0 %1641
      %1643 = vmax.xlane.f32.xlu0 %v1598
      %v1644 = vpop.xlane.xlu0 %1643
      %1645 = vmax.xlane.f32.xlu0 %v1599
      %v1646 = vpop.xlane.xlu0 %1645
      %1647 = vmax.xlane.f32.xlu0 %v1600
      %v1648 = vpop.xlane.xlu0 %1647
      %1649 = vmax.xlane.f32.xlu0 %v1601
      %v1650 = vpop.xlane.xlu0 %1649
      %1651 = vmax.xlane.f32.xlu0 %v1602
      %v1652 = vpop.xlane.xlu0 %1651
      %1653 = vmax.xlane.f32.xlu0 %v1603
      %v1654 = vpop.xlane.xlu0 %1653
      %1655 = vmax.xlane.f32.xlu0 %v1604
      %v1656 = vpop.xlane.xlu0 %1655
      %1657 = vmax.xlane.f32.xlu0 %v1605
      %v1658 = vpop.xlane.xlu0 %1657
      %1659 = vmax.xlane.f32.xlu0 %v1606
      %v1660 = vpop.xlane.xlu0 %1659
      %1661 = vmax.xlane.f32.xlu0 %v1607
      %v1662 = vpop.xlane.xlu0 %1661
      %1663 = vmax.xlane.f32.xlu0 %v1608
      %v1664 = vpop.xlane.xlu0 %1663
      %1665 = vmax.xlane.f32.xlu0 %v1609
      %v1666 = vpop.xlane.xlu0 %1665
      %1667 = vmax.xlane.f32.xlu0 %v1610
      %v1668 = vpop.xlane.xlu0 %1667
      %1669 = vmax.xlane.f32.xlu0 %v1611
      %v1670 = vpop.xlane.xlu0 %1669
      %1671 = vmax.xlane.f32.xlu0 %v1612
      %v1672 = vpop.xlane.xlu0 %1671
      %1673 = vmax.xlane.f32.xlu0 %v1613
      %v1674 = vpop.xlane.xlu0 %1673
      %1675 = vmax.xlane.f32.xlu0 %v1614
      %v1676 = vpop.xlane.xlu0 %1675
      %1677 = vmax.xlane.f32.xlu0 %v1615
      %v1678 = vpop.xlane.xlu0 %1677
      %1679 = vmax.xlane.f32.xlu0 %v1616
      %v1680 = vpop.xlane.xlu0 %1679
      %v1681 = vsub.f32 %v1585, %v1618
      %v1682 = vsub.f32 %v1586, %v1620
      %v1683 = vsub.f32 %v1587, %v1622
      %v1684 = vsub.f32 %v1588, %v1624
      %v1685 = vsub.f32 %v1589, %v1626
      %v1686 = vsub.f32 %v1590, %v1628
      %v1687 = vsub.f32 %v1591, %v1630
      %v1688 = vsub.f32 %v1592, %v1632
      %v1689 = vsub.f32 %v1593, %v1634
      %v1690 = vsub.f32 %v1594, %v1636
      %v1691 = vsub.f32 %v1595, %v1638
      %v1692 = vsub.f32 %v1596, %v1640
      %v1693 = vsub.f32 %v1597, %v1642
      %v1694 = vsub.f32 %v1598, %v1644
      %v1695 = vsub.f32 %v1599, %v1646
      %v1696 = vsub.f32 %v1600, %v1648
      %v1697 = vsub.f32 %v1601, %v1650
      %v1698 = vsub.f32 %v1602, %v1652
      %v1699 = vsub.f32 %v1603, %v1654
      %v1700 = vsub.f32 %v1604, %v1656
      %v1701 = vsub.f32 %v1605, %v1658
      %v1702 = vsub.f32 %v1606, %v1660
      %v1703 = vsub.f32 %v1607, %v1662
      %v1704 = vsub.f32 %v1608, %v1664
      %v1705 = vsub.f32 %v1609, %v1666
      %v1706 = vsub.f32 %v1610, %v1668
      %v1707 = vsub.f32 %v1611, %v1670
      %v1708 = vsub.f32 %v1612, %v1672
      %v1709 = vsub.f32 %v1613, %v1674
      %v1710 = vsub.f32 %v1614, %v1676
      %v1711 = vsub.f32 %v1615, %v1678
      %v1712 = vsub.f32 %v1616, %v1680
      %v1713 = vmul.f32 %v1681, 1.442695
      %v1714 = vpow.pop %v1713
      %v1715 = vmul.f32 %v1682, 1.442695
      %v1716 = vpow.pop %v1715
      %v1717 = vmul.f32 %v1683, 1.442695
      %v1718 = vpow.pop %v1717
      %v1719 = vmul.f32 %v1684, 1.442695
      %v1720 = vpow.pop %v1719
      %v1721 = vmul.f32 %v1685, 1.442695
      %v1722 = vpow.pop %v1721
      %v1723 = vmul.f32 %v1686, 1.442695
      %v1724 = vpow.pop %v1723
      %v1725 = vmul.f32 %v1687, 1.442695
      %v1726 = vpow.pop %v1725
      %v1727 = vmul.f32 %v1688, 1.442695
      %v1728 = vpow.pop %v1727
      %v1729 = vmul.f32 %v1689, 1.442695
      %v1730 = vpow.pop %v1729
      %v1731 = vmul.f32 %v1690, 1.442695
      %v1732 = vpow.pop %v1731
      %v1733 = vmul.f32 %v1691, 1.442695
      %v1734 = vpow.pop %v1733
      %v1735 = vmul.f32 %v1692, 1.442695
      %v1736 = vpow.pop %v1735
      %v1737 = vmul.f32 %v1693, 1.442695
      %v1738 = vpow.pop %v1737
      %v1739 = vmul.f32 %v1694, 1.442695
      %v1740 = vpow.pop %v1739
      %v1741 = vmul.f32 %v1695, 1.442695
      %v1742 = vpow.pop %v1741
      %v1743 = vmul.f32 %v1696, 1.442695
      %v1744 = vpow.pop %v1743
      %v1745 = vmul.f32 %v1697, 1.442695
      %v1746 = vpow.pop %v1745
      %v1747 = vmul.f32 %v1698, 1.442695
      %v1748 = vpow.pop %v1747
      %v1749 = vmul.f32 %v1699, 1.442695
      %v1750 = vpow.pop %v1749
      %v1751 = vmul.f32 %v1700, 1.442695
      %v1752 = vpow.pop %v1751
      %v1753 = vmul.f32 %v1701, 1.442695
      %v1754 = vpow.pop %v1753
      %v1755 = vmul.f32 %v1702, 1.442695
      %v1756 = vpow.pop %v1755
      %v1757 = vmul.f32 %v1703, 1.442695
      %v1758 = vpow.pop %v1757
      %v1759 = vmul.f32 %v1704, 1.442695
      %v1760 = vpow.pop %v1759
      %v1761 = vmul.f32 %v1705, 1.442695
      %v1762 = vpow.pop %v1761
      %v1763 = vmul.f32 %v1706, 1.442695
      %v1764 = vpow.pop %v1763
      %v1765 = vmul.f32 %v1707, 1.442695
      %v1766 = vpow.pop %v1765
      %v1767 = vmul.f32 %v1708, 1.442695
      %v1768 = vpow.pop %v1767
      %v1769 = vmul.f32 %v1709, 1.442695
      %v1770 = vpow.pop %v1769
      %v1771 = vmul.f32 %v1710, 1.442695
      %v1772 = vpow.pop %v1771
      %v1773 = vmul.f32 %v1711, 1.442695
      %v1774 = vpow.pop %v1773
      %v1775 = vmul.f32 %v1712, 1.442695
      %v1776 = vpow.pop %v1775
      %1777 = vadd.xlane.f32.xlu0 %v1714
      %v1778 = vpop.xlane.xlu0 %1777
      %1779 = vadd.xlane.f32.xlu0 %v1716
      %v1780 = vpop.xlane.xlu0 %1779
      %1781 = vadd.xlane.f32.xlu0 %v1718
      %v1782 = vpop.xlane.xlu0 %1781
      %1783 = vadd.xlane.f32.xlu0 %v1720
      %v1784 = vpop.xlane.xlu0 %1783
      %1785 = vadd.xlane.f32.xlu0 %v1722
      %v1786 = vpop.xlane.xlu0 %1785
      %1787 = vadd.xlane.f32.xlu0 %v1724
      %v1788 = vpop.xlane.xlu0 %1787
      %1789 = vadd.xlane.f32.xlu0 %v1726
      %v1790 = vpop.xlane.xlu0 %1789
      %1791 = vadd.xlane.f32.xlu0 %v1728
      %v1792 = vpop.xlane.xlu0 %1791
      %1793 = vadd.xlane.f32.xlu0 %v1730
      %v1794 = vpop.xlane.xlu0 %1793
      %1795 = vadd.xlane.f32.xlu0 %v1732
      %v1796 = vpop.xlane.xlu0 %1795
      %1797 = vadd.xlane.f32.xlu0 %v1734
      %v1798 = vpop.xlane.xlu0 %1797
      %1799 = vadd.xlane.f32.xlu0 %v1736
      %v1800 = vpop.xlane.xlu0 %1799
      %1801 = vadd.xlane.f32.xlu0 %v1738
      %v1802 = vpop.xlane.xlu0 %1801
      %1803 = vadd.xlane.f32.xlu0 %v1740
      %v1804 = vpop.xlane.xlu0 %1803
      %1805 = vadd.xlane.f32.xlu0 %v1742
      %v1806 = vpop.xlane.xlu0 %1805
      %1807 = vadd.xlane.f32.xlu0 %v1744
      %v1808 = vpop.xlane.xlu0 %1807
      %1809 = vadd.xlane.f32.xlu0 %v1746
      %v1810 = vpop.xlane.xlu0 %1809
      %1811 = vadd.xlane.f32.xlu0 %v1748
      %v1812 = vpop.xlane.xlu0 %1811
      %1813 = vadd.xlane.f32.xlu0 %v1750
      %v1814 = vpop.xlane.xlu0 %1813
      %1815 = vadd.xlane.f32.xlu0 %v1752
      %v1816 = vpop.xlane.xlu0 %1815
      %1817 = vadd.xlane.f32.xlu0 %v1754
      %v1818 = vpop.xlane.xlu0 %1817
      %1819 = vadd.xlane.f32.xlu0 %v1756
      %v1820 = vpop.xlane.xlu0 %1819
      %1821 = vadd.xlane.f32.xlu0 %v1758
      %v1822 = vpop.xlane.xlu0 %1821
      %1823 = vadd.xlane.f32.xlu0 %v1760
      %v1824 = vpop.xlane.xlu0 %1823
      %1825 = vadd.xlane.f32.xlu0 %v1762
      %v1826 = vpop.xlane.xlu0 %1825
      %1827 = vadd.xlane.f32.xlu0 %v1764
      %v1828 = vpop.xlane.xlu0 %1827
      %1829 = vadd.xlane.f32.xlu0 %v1766
      %v1830 = vpop.xlane.xlu0 %1829
      %1831 = vadd.xlane.f32.xlu0 %v1768
      %v1832 = vpop.xlane.xlu0 %1831
      %1833 = vadd.xlane.f32.xlu0 %v1770
      %v1834 = vpop.xlane.xlu0 %1833
      %1835 = vadd.xlane.f32.xlu0 %v1772
      %v1836 = vpop.xlane.xlu0 %1835
      %1837 = vadd.xlane.f32.xlu0 %v1774
      %v1838 = vpop.xlane.xlu0 %1837
      %1839 = vadd.xlane.f32.xlu0 %v1776
      %v1840 = vpop.xlane.xlu0 %1839
      %v1841 = vrcp.pop %v1778
      %v1842 = vrcp.pop %v1780
      %v1843 = vrcp.pop %v1782
      %v1844 = vrcp.pop %v1784
      %v1845 = vrcp.pop %v1786
      %v1846 = vrcp.pop %v1788
      %v1847 = vrcp.pop %v1790
      %v1848 = vrcp.pop %v1792
      %v1849 = vrcp.pop %v1794
      %v1850 = vrcp.pop %v1796
      %v1851 = vrcp.pop %v1798
      %v1852 = vrcp.pop %v1800
      %v1853 = vrcp.pop %v1802
      %v1854 = vrcp.pop %v1804
      %v1855 = vrcp.pop %v1806
      %v1856 = vrcp.pop %v1808
      %v1857 = vrcp.pop %v1810
      %v1858 = vrcp.pop %v1812
      %v1859 = vrcp.pop %v1814
      %v1860 = vrcp.pop %v1816
      %v1861 = vrcp.pop %v1818
      %v1862 = vrcp.pop %v1820
      %v1863 = vrcp.pop %v1822
      %v1864 = vrcp.pop %v1824
      %v1865 = vrcp.pop %v1826
      %v1866 = vrcp.pop %v1828
      %v1867 = vrcp.pop %v1830
      %v1868 = vrcp.pop %v1832
      %v1869 = vrcp.pop %v1834
      %v1870 = vrcp.pop %v1836
      %v1871 = vrcp.pop %v1838
      %v1872 = vrcp.pop %v1840
      %v1873 = vmul.f32 %v1714, %v1841
      %v1874 = vmul.f32 %v1716, %v1842
      %v1875 = vmul.f32 %v1718, %v1843
      %v1876 = vmul.f32 %v1720, %v1844
      %v1877 = vmul.f32 %v1722, %v1845
      %v1878 = vmul.f32 %v1724, %v1846
      %v1879 = vmul.f32 %v1726, %v1847
      %v1880 = vmul.f32 %v1728, %v1848
      %v1881 = vmul.f32 %v1730, %v1849
      %v1882 = vmul.f32 %v1732, %v1850
      %v1883 = vmul.f32 %v1734, %v1851
      %v1884 = vmul.f32 %v1736, %v1852
      %v1885 = vmul.f32 %v1738, %v1853
      %v1886 = vmul.f32 %v1740, %v1854
      %v1887 = vmul.f32 %v1742, %v1855
      %v1888 = vmul.f32 %v1744, %v1856
      %v1889 = vmul.f32 %v1746, %v1857
      %v1890 = vmul.f32 %v1748, %v1858
      %v1891 = vmul.f32 %v1750, %v1859
      %v1892 = vmul.f32 %v1752, %v1860
      %v1893 = vmul.f32 %v1754, %v1861
      %v1894 = vmul.f32 %v1756, %v1862
      %v1895 = vmul.f32 %v1758, %v1863
      %v1896 = vmul.f32 %v1760, %v1864
      %v1897 = vmul.f32 %v1762, %v1865
      %v1898 = vmul.f32 %v1764, %v1866
      %v1899 = vmul.f32 %v1766, %v1867
      %v1900 = vmul.f32 %v1768, %v1868
      %v1901 = vmul.f32 %v1770, %v1869
      %v1902 = vmul.f32 %v1772, %v1870
      %v1903 = vmul.f32 %v1774, %v1871
      %v1904 = vmul.f32 %v1776, %v1872
      %1905 = vst [vmem:[%s445] sm:$0xff] %v1873
      %1906 = vst [vmem:[%s445 + $0x8] sm:$0xff] %v1874
      %1907 = vst [vmem:[%s445 + $0x10] sm:$0xff] %v1875
      %1908 = vst [vmem:[%s445 + $0x18] sm:$0xff] %v1876
      %1909 = vst [vmem:[%s445 + $0x20] sm:$0xff] %v1877
      %1910 = vst [vmem:[%s445 + $0x28] sm:$0xff] %v1878
      %1911 = vst [vmem:[%s445 + $0x30] sm:$0xff] %v1879
      %1912 = vst [vmem:[%s445 + $0x38] sm:$0xff] %v1880
      %1913 = vst [vmem:[%s445 + $0x40] sm:$0xff] %v1881
      %1914 = vst [vmem:[%s445 + $0x48] sm:$0xff] %v1882
      %1915 = vst [vmem:[%s445 + $0x50] sm:$0xff] %v1883
      %1916 = vst [vmem:[%s445 + $0x58] sm:$0xff] %v1884
      %1917 = vst [vmem:[%s445 + $0x60] sm:$0xff] %v1885
      %1918 = vst [vmem:[%s445 + $0x68] sm:$0xff] %v1886
      %1919 = vst [vmem:[%s445 + $0x70] sm:$0xff] %v1887
      %1920 = vst [vmem:[%s445 + $0x78] sm:$0xff] %v1888
      %1921 = vst [vmem:[%s445 + $0x80] sm:$0xff] %v1889
      %1922 = vst [vmem:[%s445 + $0x88] sm:$0xff] %v1890
      %1923 = vst [vmem:[%s445 + $0x90] sm:$0xff] %v1891
      %1924 = vst [vmem:[%s445 + $0x98] sm:$0xff] %v1892
      %1925 = vst [vmem:[%s445 + $0xa0] sm:$0xff] %v1893
      %1926 = vst [vmem:[%s445 + $0xa8] sm:$0xff] %v1894
      %1927 = vst [vmem:[%s445 + $0xb0] sm:$0xff] %v1895
      %1928 = vst [vmem:[%s445 + $0xb8] sm:$0xff] %v1896
      %1929 = vst [vmem:[%s445 + $0xc0] sm:$0xff] %v1897
      %1930 = vst [vmem:[%s445 + $0xc8] sm:$0xff] %v1898
      %1931 = vst [vmem:[%s445 + $0xd0] sm:$0xff] %v1899
      %1932 = vst [vmem:[%s445 + $0xd8] sm:$0xff] %v1900
      %1933 = vst [vmem:[%s445 + $0xe0] sm:$0xff] %v1901
      %1934 = vst [vmem:[%s445 + $0xe8] sm:$0xff] %v1902
      %1935 = vst [vmem:[%s445 + $0xf0] sm:$0xff] %v1903
      %1936 = vst [vmem:[%s445 + $0xf8] sm:$0xff] %v1904
      %s1937 = smul.u32 32, %s27
      %p1938 = scmp.lt.s32.totalorder %s26, 1
      %s1939 = scalar_select %p1938, %s26, 1
      %p1940 = scmp.lt.s32.totalorder %s1937, 31
      %s1941 = scalar_select %p1940, %s1937, 31
      %s1942 = smul.addr %s1939, 32
      %s1943 = sadd.s32 %s1941, %s1942
      %s1944 = smul.addr %s1943, 8
      %s1945 = scalar_lea.vmem %s9, %s1944
      %s1946 = smul.u32 32, %s27
      %p1947 = scmp.lt.s32.totalorder %s26, 1
      %s1948 = scalar_select %p1947, %s26, 1
      %p1949 = scmp.lt.s32.totalorder %s1946, 31
      %s1950 = scalar_select %p1949, %s1946, 31
      %s1951 = smul.addr %s1948, 32
      %s1952 = sadd.s32 %s1950, %s1951
      %s1953 = smul.addr %s1952, 8
      %s1954 = scalar_lea.vmem %s10, %s1953
      // Predicated region
      $region57: #{conv_attention_forward.3} parent=55 // pred_check
        %p1955 = pneg %p260
      $region58: #{conv_attention_forward.3} parent=55 // pred_check_branch
        %1957 = sbr.rel (%p1955) target = $region60
      $region59: #{conv_attention_forward.3} parent=55 // pred_region
        %s1958 = smul.u32 32, %s27
      $region60: #{conv_attention_forward.3} parent=55 // pred_fallthru
        _
      // Predicated region
      $region61: #{conv_attention_forward.3} parent=55 // pred_check
        %p1959 = pneg %p288
      $region62: #{conv_attention_forward.3} parent=55 // pred_check_branch
        %1961 = sbr.rel (%p1959) target = $region64
      $region63: #{conv_attention_forward.3} parent=55 // pred_region
        %s1962 = smul.u32 32, %s27
      $region64: #{conv_attention_forward.3} parent=55 // pred_fallthru
        _
    $region56: #{conv_attention_forward.3} parent=5 // pred_fallthru
      _
    %p1963 = scmp.le.s32.totalorder 2, %s17
    // Predicated region
    $region65: #{conv_attention_forward.3} parent=5 // pred_check
      %p1964 = pneg %p1963
    $region66: #{conv_attention_forward.3} parent=5 // pred_check_branch
      %1966 = sbr.rel (%p1964) target = $region68
    $region67: #{conv_attention_forward.3} parent=5 // pred_region
      %s1967 = ssub.s32 %s17, 2
      // Predicated region
      $region69: #{conv_attention_forward.3} parent=67 // pred_check
        %p1968 = pneg %p266
      $region70: #{conv_attention_forward.3} parent=67 // pred_check_branch
        %1970 = sbr.rel (%p1968) target = $region72
      $region71: #{conv_attention_forward.3} parent=67 // pred_region
        %s1971 = smul.u32 32, %s29
        %p1972 = scmp.lt.s32.totalorder %s28, 1
        %s1973 = scalar_select %p1972, %s28, 1
        %p1974 = scmp.lt.s32.totalorder %s1971, 31
        %s1975 = scalar_select %p1974, %s1971, 31
        %s1976 = smul.addr %s1973, 32
        %s1977 = sadd.s32 %s1975, %s1976
        %s1978 = smul.addr %s1977, 8
        %s1979 = scalar_lea.vmem %s9, %s1978
      $region72: #{conv_attention_forward.3} parent=67 // pred_fallthru
        _
      // Predicated region
      $region73: #{conv_attention_forward.3} parent=67 // pred_check
        %p1980 = pneg %p294
      $region74: #{conv_attention_forward.3} parent=67 // pred_check_branch
        %1982 = sbr.rel (%p1980) target = $region76
      $region75: #{conv_attention_forward.3} parent=67 // pred_region
        %s1983 = smul.u32 32, %s29
        %p1984 = scmp.lt.s32.totalorder %s28, 1
        %s1985 = scalar_select %p1984, %s28, 1
        %p1986 = scmp.lt.s32.totalorder %s1983, 31
        %s1987 = scalar_select %p1986, %s1983, 31
        %s1988 = smul.addr %s1985, 32
        %s1989 = sadd.s32 %s1987, %s1988
        %s1990 = smul.addr %s1989, 8
        %s1991 = scalar_lea.vmem %s10, %s1990
      $region76: #{conv_attention_forward.3} parent=67 // pred_fallthru
        _
    $region68: #{conv_attention_forward.3} parent=5 // pred_fallthru
      _
  $region6: #{conv_attention_forward.3} parent=0 // loop_footer
    %s21 = sadd.s32 1, %s17
  $region7: #{conv_attention_forward.3} parent=0 // loop_footer_branch
    %16 = sbr.rel target = $region3
  $region8: #{conv_attention_forward.3} parent=0 // loop_exit
    _

</llo_original>
